<compile_context>
chip_gen: v7x
topology: tpu7x:2x2x1
jax: 0.10.0
libtpu: 0.0.40
codegen_flags: <defaults>
</compile_context>

<pallas_src>
import functools

import jax
import jax.numpy as jnp
from jax.experimental import pallas as pl
from jax.experimental.pallas import tpu as pltpu


def _auv_kernel(xr_ref, xi_ref, csr_ref, csi_ref,
                fcr_ref, fci_ref, gr_ref, gi_ref, mask_ref, out_ref):
    """One (coil, frame-tile) grid cell.

    xr/xi   : (TF, nx, nx)      basis-combined images X_f (real / imag)
    csr/csi : (1, nx, nx)       coil sensitivity of this coil
    fcr/fci : (nx, nx)          centered DFT matrix Fc (real / imag)
    gr/gi   : (nx, 2*nx)        Fc^T with the real/imag interleave folded in
    mask    : (TF*nx, 2*nx)     interleaved k-space sampling mask
    out     : (1, TF*nx, 2*nx)  interleaved masked k-space
    """
    tf, nx, _ = xr_ref.shape
    dot_dt = fcr_ref.dtype          # matmul operand dtype (f32 or bf16)

    cr = csr_ref[0]
    ci = csi_ref[0]
    xr = xr_ref[...]
    xi = xi_ref[...]

    # W_f = X_f * csm_i  (complex elementwise; csm broadcast over frame tile)
    wr = xr * cr - xi * ci
    wi = xr * ci + xi * cr

    # ---- stage 1:  B_f = Fc @ W_f  (batched over the frame tile on the MXU),
    #      Gauss / Karatsuba 3-multiply complex matmul (3 dots + VPU adds).
    fcr_b = jnp.broadcast_to(fcr_ref[...], (tf, nx, nx))
    fci_b = jnp.broadcast_to(fci_ref[...], (tf, nx, nx))
    fcs_b = jnp.broadcast_to(fcr_ref[...] + fci_ref[...], (tf, nx, nx))
    wr_c = wr.astype(dot_dt)
    wi_c = wi.astype(dot_dt)
    ws_c = (wr + wi).astype(dot_dt)
    t1 = jnp.einsum("fij,fjk->fik", fcr_b, wr_c,
                    preferred_element_type=jnp.float32)
    t2 = jnp.einsum("fij,fjk->fik", fci_b, wi_c,
                    preferred_element_type=jnp.float32)
    t3 = jnp.einsum("fij,fjk->fik", fcs_b, ws_c,
                    preferred_element_type=jnp.float32)
    br = t1 - t2                    # real(Fc @ W)
    bi = t3 - t1 - t2               # imag(Fc @ W)

    # ---- stage 2:  Z_f = B_f @ Fc^T with the real/imag column interleave
    #      folded into Gr/Gi.  Frames stacked along rows -> M = TF*nx.
    b2r = br.reshape(tf * nx, nx).astype(dot_dt)
    b2i = bi.reshape(tf * nx, nx).astype(dot_dt)
    z = (jnp.dot(b2r, gr_ref[...], preferred_element_type=jnp.float32)
         + jnp.dot(b2i, gi_ref[...], preferred_element_type=jnp.float32))

    # k-space sampling mask (elementwise, already in interleaved layout).
    out_ref[0] = z * mask_ref[...]


def _pick_frame_tile(NF, nx, budget_bytes=8 * 1024 * 1024):
    """Largest divisor of NF whose per-step frame-scaled VMEM fits a budget."""
    per_frame = 24 * nx * nx            # X(re,im) + mask + out, f32 bytes
    max_tf = max(8, 128 // nx)          # aim for >=128 MXU rows when nx small
    cap = max(1, min(NF, max_tf, budget_bytes // per_frame))
    tf = 1
    for d in range(1, cap + 1):
        if NF % d == 0:
            tf = d
    return tf


@functools.partial(jax.jit, static_argnames=("matmul_dtype",))
def auv_forward(x, csmT, maskT, VT, matmul_dtype=jnp.float32):
    """AUV.forward.

    x     : (nbasis, nx*nx*2) f32    spatial basis images (interleaved re/im)
    csmT  : (nch, nx, nx, 2)  f32    coil sensitivities
    maskT : (NF, nx*nx*2)     bool   k-space sampling mask
    VT    : (nbasis, NF)      f32    temporal basis
    returns (nch, NF, nx*nx*2) f32
    """
    nch, nx = csmT.shape[0], csmT.shape[1]
    nbasis, NF = VT.shape
    NX = nx * nx * 2
    nx2 = 2 * nx
    f32 = jnp.float32

    # --- temporal-basis contraction hoisted out of the coil loop (coil
    #     independent; exact by linearity of csm-multiply / FFT / 0-1 mask):
    #     X_f = sum_b VT[b, f] * x_b                         (one MXU matmul)
    x3 = jnp.reshape(x.astype(f32), (nbasis, nx * nx, 2))
    vt = VT.astype(f32)
    Xr = jnp.dot(vt.T, x3[..., 0]).reshape(NF, nx, nx)
    Xi = jnp.dot(vt.T, x3[..., 1]).reshape(NF, nx, nx)

    csr = csmT[..., 0].astype(f32)
    csi = csmT[..., 1].astype(f32)

    # --- centered orthonormal DFT matrix Fc (constant; constant-folds under
    #     jit so it is not recomputed / re-DMA'd per call).
    eye = jnp.eye(nx, dtype=jnp.complex64)
    Fc = jnp.fft.fftshift(
        jnp.fft.fft(jnp.fft.ifftshift(eye, axes=0), axis=0, norm="ortho"),
        axes=0)
    fcr = jnp.real(Fc).astype(matmul_dtype)
    fci = jnp.imag(Fc).astype(matmul_dtype)
    # G = Fc^T with the output real/imag interleave folded into its columns:
    #   interleave(real(B @ Fc^T), imag(B @ Fc^T)) == Br @ Gr + Bi @ Gi
    fctr = jnp.real(Fc).T.astype(f32)
    fcti = jnp.imag(Fc).T.astype(f32)
    gr = jnp.stack([fctr, fcti], axis=-1).reshape(nx, nx2).astype(matmul_dtype)
    gi = jnp.stack([-fcti, fctr], axis=-1).reshape(nx, nx2).astype(matmul_dtype)

    # interleaved sampling mask in a lane-dense 2-D layout (NF*nx, 2*nx)
    mask2d = maskT.astype(f32).reshape(NF * nx, nx2)

    TF = _pick_frame_tile(NF, nx)
    grid = (nch, NF // TF)

    # NOTE: fcr/fci/gr/gi have constant index_maps; if the pipeliner still
    # double-buffers them, pipeline_mode=pl.Buffered(1) would reclaim that
    # VMEM on v7x (left at default here for portability).
    out2d = pl.pallas_call(
        _auv_kernel,
        grid=grid,
        in_specs=[
            pl.BlockSpec((TF, nx, nx), lambda i, f: (f, 0, 0)),      # X real
            pl.BlockSpec((TF, nx, nx), lambda i, f: (f, 0, 0)),      # X imag
            pl.BlockSpec((1, nx, nx), lambda i, f: (i, 0, 0)),       # csm real
            pl.BlockSpec((1, nx, nx), lambda i, f: (i, 0, 0)),       # csm imag
            pl.BlockSpec((nx, nx), lambda i, f: (0, 0)),             # Fc real
            pl.BlockSpec((nx, nx), lambda i, f: (0, 0)),             # Fc imag
            pl.BlockSpec((nx, nx2), lambda i, f: (0, 0)),            # Gr
            pl.BlockSpec((nx, nx2), lambda i, f: (0, 0)),            # Gi
            pl.BlockSpec((TF * nx, nx2), lambda i, f: (f, 0)),       # mask
        ],
        out_specs=pl.BlockSpec((1, TF * nx, nx2), lambda i, f: (i, f, 0)),
        out_shape=jax.ShapeDtypeStruct((nch, NF * nx, nx2), f32),
        compiler_params=pltpu.CompilerParams(
            dimension_semantics=("parallel", "parallel"),
            vmem_limit_bytes=48 * 1024 * 1024),
    )(Xr, Xi, csr, csi, fcr, fci, gr, gi, mask2d)

    # free reshape (contiguous trailing-dim merge) -> PyTorch output layout
    return out2d.reshape(nch, NF, NX)


def _auv_reference(x, csmT, maskT, VT):
    """Pure-JAX re-implementation of the PyTorch loops (k -> j)."""
    nch, nx = csmT.shape[0], csmT.shape[1]
    nbasis, NF = VT.shape
    NX = nx * nx * 2
    xc = x.reshape(nbasis, nx, nx, 2)
    xc = xc[..., 0] + 1j * xc[..., 1]
    csm = csmT[..., 0] + 1j * csmT[..., 1]
    coils = []
    for i in range(nch):
        m = xc * csm[i][None]
        spec = jnp.fft.fftshift(
            jnp.fft.fft2(jnp.fft.ifftshift(m, axes=(-2, -1)), norm="ortho"),
            axes=(-2, -1))
        spec2 = jnp.stack([spec.real, spec.imag], -1).reshape(nbasis, NX)
        frames = []
        for j in range(NF):
            tmp3 = maskT[j].astype(jnp.float32)[None, :] * spec2
            frames.append(tmp3.T @ VT[:, j])
        coils.append(jnp.stack(frames, 0))
    return jnp.stack(coils, 0)


if __name__ == "__main__":
    key = jax.random.PRNGKey(0)
    nbasis, nx, nch, NF = 8, 16, 4, 12
    NX = nx * nx * 2
    k1, k2, k3, k4 = jax.random.split(key, 4)

    x = jax.random.normal(k1, (nbasis, NX), dtype=jnp.float32)
    csmT = jax.random.normal(k2, (nch, nx, nx, 2), dtype=jnp.float32)
    maskT = jax.random.uniform(k3, (NF, NX)) > 0.5
    VT = jax.random.normal(k4, (nbasis, NF), dtype=jnp.float32)

    out = auv_forward(x, csmT, maskT, VT)
    out = jax.block_until_ready(out)
    assert out.shape == (nch, NF, NX) and out.dtype == jnp.float32

    ref = _auv_reference(x, csmT, maskT, VT)
    err = float(jnp.max(jnp.abs(out - ref)))
    scale = float(jnp.max(jnp.abs(ref)))
    assert err <= 1e-3 * scale + 1e-4, (err, scale)

    print("KERNEL_OK")
</pallas_src>

<mosaic_0001>
module attributes {stable_mosaic.version = 11 : i64} {
  func.func @_auv_kernel(%arg0: i32, %arg1: i32, %arg2: memref<6x16x16xf32, #tpu.memory_space<vmem>>, %arg3: memref<6x16x16xf32, #tpu.memory_space<vmem>>, %arg4: memref<1x16x16xf32, #tpu.memory_space<vmem>>, %arg5: memref<1x16x16xf32, #tpu.memory_space<vmem>>, %arg6: memref<16x16xf32, #tpu.memory_space<vmem>>, %arg7: memref<16x16xf32, #tpu.memory_space<vmem>>, %arg8: memref<16x32xf32, #tpu.memory_space<vmem>>, %arg9: memref<16x32xf32, #tpu.memory_space<vmem>>, %arg10: memref<96x32xf32, #tpu.memory_space<vmem>>, %arg11: memref<1x96x32xf32, #tpu.memory_space<vmem>>) attributes {dimension_semantics = [#tpu.dimension_semantics<parallel>, #tpu.dimension_semantics<parallel>], iteration_bounds = array<i64: 4, 2>, scalar_prefetch = 0 : i64, scratch_operands = 0 : i64, tpu.core_type = #tpu.core_type<tc>, window_params = [{transform_indices = @transform_0, window_bounds = array<i64: 6, 16, 16>}, {transform_indices = @transform_1, window_bounds = array<i64: 6, 16, 16>}, {transform_indices = @transform_2, window_bounds = array<i64: 1, 16, 16>}, {transform_indices = @transform_3, window_bounds = array<i64: 1, 16, 16>}, {pipeline_mode = #tpu.pipeline_mode<synchronous>, transform_indices = @transform_4, window_bounds = array<i64: 16, 16>}, {pipeline_mode = #tpu.pipeline_mode<synchronous>, transform_indices = @transform_5, window_bounds = array<i64: 16, 16>}, {pipeline_mode = #tpu.pipeline_mode<synchronous>, transform_indices = @transform_6, window_bounds = array<i64: 16, 32>}, {pipeline_mode = #tpu.pipeline_mode<synchronous>, transform_indices = @transform_7, window_bounds = array<i64: 16, 32>}, {transform_indices = @transform_8, window_bounds = array<i64: 96, 32>}, {transform_indices = @transform_9, window_bounds = array<i64: 1, 96, 32>}]} {
    %c0 = arith.constant 0 : index
    %c0_0 = arith.constant 0 : index
    %c0_1 = arith.constant 0 : index
    %0 = vector.load %arg4[%c0, %c0_0, %c0_1] : memref<1x16x16xf32, #tpu.memory_space<vmem>>, vector<1x16x16xf32>
    %1 = vector.shape_cast %0 : vector<1x16x16xf32> to vector<16x16xf32>
    %c0_2 = arith.constant 0 : index
    %c0_3 = arith.constant 0 : index
    %c0_4 = arith.constant 0 : index
    %2 = vector.load %arg5[%c0_2, %c0_3, %c0_4] : memref<1x16x16xf32, #tpu.memory_space<vmem>>, vector<1x16x16xf32>
    %3 = vector.shape_cast %2 : vector<1x16x16xf32> to vector<16x16xf32>
    %c0_5 = arith.constant 0 : index
    %c0_6 = arith.constant 0 : index
    %c0_7 = arith.constant 0 : index
    %4 = vector.load %arg2[%c0_5, %c0_6, %c0_7] : memref<6x16x16xf32, #tpu.memory_space<vmem>>, vector<6x16x16xf32>
    %c0_8 = arith.constant 0 : index
    %c0_9 = arith.constant 0 : index
    %c0_10 = arith.constant 0 : index
    %5 = vector.load %arg3[%c0_8, %c0_9, %c0_10] : memref<6x16x16xf32, #tpu.memory_space<vmem>>, vector<6x16x16xf32>
    %6 = vector.shape_cast %1 : vector<16x16xf32> to vector<1x16x16xf32>
    %7 = vector.broadcast %6 : vector<1x16x16xf32> to vector<6x16x16xf32>
    %8 = arith.mulf %4, %7 : vector<6x16x16xf32>
    %9 = vector.shape_cast %3 : vector<16x16xf32> to vector<1x16x16xf32>
    %10 = vector.broadcast %9 : vector<1x16x16xf32> to vector<6x16x16xf32>
    %11 = arith.mulf %5, %10 : vector<6x16x16xf32>
    %12 = arith.subf %8, %11 : vector<6x16x16xf32>
    %13 = vector.shape_cast %3 : vector<16x16xf32> to vector<1x16x16xf32>
    %14 = vector.broadcast %13 : vector<1x16x16xf32> to vector<6x16x16xf32>
    %15 = arith.mulf %4, %14 : vector<6x16x16xf32>
    %16 = vector.shape_cast %1 : vector<16x16xf32> to vector<1x16x16xf32>
    %17 = vector.broadcast %16 : vector<1x16x16xf32> to vector<6x16x16xf32>
    %18 = arith.mulf %5, %17 : vector<6x16x16xf32>
    %19 = arith.addf %15, %18 : vector<6x16x16xf32>
    %c0_11 = arith.constant 0 : index
    %c0_12 = arith.constant 0 : index
    %20 = vector.load %arg6[%c0_11, %c0_12] : memref<16x16xf32, #tpu.memory_space<vmem>>, vector<16x16xf32>
    %21 = vector.shape_cast %20 : vector<16x16xf32> to vector<1x16x16xf32>
    %22 = vector.broadcast %21 : vector<1x16x16xf32> to vector<6x16x16xf32>
    %c0_13 = arith.constant 0 : index
    %c0_14 = arith.constant 0 : index
    %23 = vector.load %arg7[%c0_13, %c0_14] : memref<16x16xf32, #tpu.memory_space<vmem>>, vector<16x16xf32>
    %24 = vector.shape_cast %23 : vector<16x16xf32> to vector<1x16x16xf32>
    %25 = vector.broadcast %24 : vector<1x16x16xf32> to vector<6x16x16xf32>
    %c0_15 = arith.constant 0 : index
    %c0_16 = arith.constant 0 : index
    %26 = vector.load %arg6[%c0_15, %c0_16] : memref<16x16xf32, #tpu.memory_space<vmem>>, vector<16x16xf32>
    %c0_17 = arith.constant 0 : index
    %c0_18 = arith.constant 0 : index
    %27 = vector.load %arg7[%c0_17, %c0_18] : memref<16x16xf32, #tpu.memory_space<vmem>>, vector<16x16xf32>
    %28 = arith.addf %26, %27 : vector<16x16xf32>
    %29 = vector.shape_cast %28 : vector<16x16xf32> to vector<1x16x16xf32>
    %30 = vector.broadcast %29 : vector<1x16x16xf32> to vector<6x16x16xf32>
    %31 = arith.addf %12, %19 : vector<6x16x16xf32>
    "tpu.trace_start"() <{level = 10 : i32, message = "fij,fjk->fik"}> : () -> ()
    %cst = arith.constant dense<0.000000e+00> : vector<6x16x16xf32>
    %32 = tpu.matmul %22, %12, %cst {dimension_numbers = #tpu.dot_dimension_numbers<[2], [1], [1], [2], [0, 0, 0, 1, 1, 2], [0], [0]>} : vector<6x16x16xf32>, vector<6x16x16xf32>, vector<6x16x16xf32> -> vector<6x16x16xf32>
    %cst_19 = arith.constant dense<0.000000e+00> : vector<6x16x16xf32>
    %33 = tpu.matmul %25, %19, %cst_19 {dimension_numbers = #tpu.dot_dimension_numbers<[2], [1], [1], [2], [0, 0, 0, 1, 1, 2], [0], [0]>} : vector<6x16x16xf32>, vector<6x16x16xf32>, vector<6x16x16xf32> -> vector<6x16x16xf32>
    %cst_20 = arith.constant dense<0.000000e+00> : vector<6x16x16xf32>
    %34 = tpu.matmul %30, %31, %cst_20 {dimension_numbers = #tpu.dot_dimension_numbers<[2], [1], [1], [2], [0, 0, 0, 1, 1, 2], [0], [0]>} : vector<6x16x16xf32>, vector<6x16x16xf32>, vector<6x16x16xf32> -> vector<6x16x16xf32>
    "tpu.trace_stop"() : () -> ()
    %35 = arith.subf %32, %33 : vector<6x16x16xf32>
    %36 = arith.subf %34, %32 : vector<6x16x16xf32>
    %37 = arith.subf %36, %33 : vector<6x16x16xf32>
    %38 = vector.shape_cast %35 : vector<6x16x16xf32> to vector<96x16xf32>
    %39 = vector.shape_cast %37 : vector<6x16x16xf32> to vector<96x16xf32>
    %c0_21 = arith.constant 0 : index
    %c0_22 = arith.constant 0 : index
    %40 = vector.load %arg8[%c0_21, %c0_22] : memref<16x32xf32, #tpu.memory_space<vmem>>, vector<16x32xf32>
    %cst_23 = arith.constant dense<0.000000e+00> : vector<96x32xf32>
    %41 = tpu.matmul %38, %40, %cst_23 {dimension_numbers = #tpu.dot_dimension_numbers<[1], [0], [0], [1], [0, 0, 1, 1], [], []>} : vector<96x16xf32>, vector<16x32xf32>, vector<96x32xf32> -> vector<96x32xf32>
    %c0_24 = arith.constant 0 : index
    %c0_25 = arith.constant 0 : index
    %42 = vector.load %arg9[%c0_24, %c0_25] : memref<16x32xf32, #tpu.memory_space<vmem>>, vector<16x32xf32>
    %cst_26 = arith.constant dense<0.000000e+00> : vector<96x32xf32>
    %43 = tpu.matmul %39, %42, %cst_26 {dimension_numbers = #tpu.dot_dimension_numbers<[1], [0], [0], [1], [0, 0, 1, 1], [], []>} : vector<96x16xf32>, vector<16x32xf32>, vector<96x32xf32> -> vector<96x32xf32>
    %44 = arith.addf %41, %43 : vector<96x32xf32>
    %c0_27 = arith.constant 0 : index
    %c0_28 = arith.constant 0 : index
    %45 = vector.load %arg10[%c0_27, %c0_28] : memref<96x32xf32, #tpu.memory_space<vmem>>, vector<96x32xf32>
    %46 = arith.mulf %44, %45 : vector<96x32xf32>
    %c0_29 = arith.constant 0 : index
    %c0_30 = arith.constant 0 : index
    %c0_31 = arith.constant 0 : index
    %47 = vector.load %arg11[%c0_29, %c0_30, %c0_31] : memref<1x96x32xf32, #tpu.memory_space<vmem>>, vector<1x96x32xf32>
    %48 = vector.shape_cast %47 : vector<1x96x32xf32> to vector<96x32xf32>
    %49 = vector.shape_cast %46 : vector<96x32xf32> to vector<1x96x32xf32>
    tpu.vector_store %arg11[%c0_29, %c0_30, %c0_31], %49 {strides = array<i32>} : memref<1x96x32xf32, #tpu.memory_space<vmem>>, vector<1x96x32xf32>,
    return
  }
  func.func @transform_0(%arg0: i32, %arg1: i32) -> (i32, i32, i32) {
    %c0_i32 = arith.constant 0 : i32
    %c0_i32_0 = arith.constant 0 : i32
    %c0_i32_1 = arith.constant 0 : i32
    return %arg1, %c0_i32, %c0_i32_0 : i32, i32, i32
  }
  func.func @transform_1(%arg0: i32, %arg1: i32) -> (i32, i32, i32) {
    %c0_i32 = arith.constant 0 : i32
    %c0_i32_0 = arith.constant 0 : i32
    %c0_i32_1 = arith.constant 0 : i32
    return %arg1, %c0_i32, %c0_i32_0 : i32, i32, i32
  }
  func.func @transform_2(%arg0: i32, %arg1: i32) -> (i32, i32, i32) {
    %c0_i32 = arith.constant 0 : i32
    %c0_i32_0 = arith.constant 0 : i32
    %c0_i32_1 = arith.constant 0 : i32
    return %arg0, %c0_i32, %c0_i32_0 : i32, i32, i32
  }
  func.func @transform_3(%arg0: i32, %arg1: i32) -> (i32, i32, i32) {
    %c0_i32 = arith.constant 0 : i32
    %c0_i32_0 = arith.constant 0 : i32
    %c0_i32_1 = arith.constant 0 : i32
    return %arg0, %c0_i32, %c0_i32_0 : i32, i32, i32
  }
  func.func @transform_4(%arg0: i32, %arg1: i32) -> (i32, i32) {
    %c0_i32 = arith.constant 0 : i32
    %c0_i32_0 = arith.constant 0 : i32
    %c0_i32_1 = arith.constant 0 : i32
    return %c0_i32, %c0_i32_0 : i32, i32
  }
  func.func @transform_5(%arg0: i32, %arg1: i32) -> (i32, i32) {
    %c0_i32 = arith.constant 0 : i32
    %c0_i32_0 = arith.constant 0 : i32
    %c0_i32_1 = arith.constant 0 : i32
    return %c0_i32, %c0_i32_0 : i32, i32
  }
  func.func @transform_6(%arg0: i32, %arg1: i32) -> (i32, i32) {
    %c0_i32 = arith.constant 0 : i32
    %c0_i32_0 = arith.constant 0 : i32
    %c0_i32_1 = arith.constant 0 : i32
    return %c0_i32, %c0_i32_0 : i32, i32
  }
  func.func @transform_7(%arg0: i32, %arg1: i32) -> (i32, i32) {
    %c0_i32 = arith.constant 0 : i32
    %c0_i32_0 = arith.constant 0 : i32
    %c0_i32_1 = arith.constant 0 : i32
    return %c0_i32, %c0_i32_0 : i32, i32
  }
  func.func @transform_8(%arg0: i32, %arg1: i32) -> (i32, i32) {
    %c0_i32 = arith.constant 0 : i32
    %c0_i32_0 = arith.constant 0 : i32
    return %arg1, %c0_i32 : i32, i32
  }
  func.func @transform_9(%arg0: i32, %arg1: i32) -> (i32, i32, i32) {
    %c0_i32 = arith.constant 0 : i32
    %c0_i32_0 = arith.constant 0 : i32
    return %arg0, %arg1, %c0_i32 : i32, i32, i32
  }
}

</mosaic_0001>

<llo_original>
// kernel: auv_forward.1
$region0: #{auv_forward.1}
  #allocation0 [shape = 'u32[]', space=smem, size = 0x4, offset = 0x4, fixed_abs, tag = 'smem constant byte address 0x4 - core index']
  #allocation1 [shape = 'u32[144,128]{1,0:T(1,128)}', space=vmem, size = 0x12000, scoped, tag = 'internal scratch']
  %s0 = inlined_call_operand.vmem [shape: f32[12,16,16], index: 0, kind: input, shape index: {}]
  %s1 = inlined_call_operand.vmem [shape: f32[12,16,16], index: 1, kind: input, shape index: {}]
  %s2 = inlined_call_operand.vmem [shape: f32[4,16,16], index: 2, kind: input, shape index: {}]
  %s3 = inlined_call_operand.vmem [shape: f32[4,16,16], index: 3, kind: input, shape index: {}]
  %s4 = inlined_call_operand.vmem [shape: f32[16,16], index: 4, kind: input, shape index: {}]
  %s5 = inlined_call_operand.vmem [shape: f32[16,16], index: 5, kind: input, shape index: {}]
  %s6 = inlined_call_operand.vmem [shape: f32[16,32], index: 6, kind: input, shape index: {}]
  %s7 = inlined_call_operand.vmem [shape: f32[16,32], index: 7, kind: input, shape index: {}]
  %s8 = inlined_call_operand.vmem [shape: f32[192,32], index: 8, kind: input, shape index: {}]
  %s9 = inlined_call_operand.vmem [shape: f32[4,192,32], index: 9, kind: output, shape index: {}]
  %s10 = sld [smem:[#allocation0]]
  $region69: #{auv_forward.1} parent=0
    _
  %s12 = ssub.s32 1, %s10
  %s13 = scalar_select 0, %s12, %s10
  loop: start=0, step=1, limit=10
  $region2: #{auv_forward.1} parent=0 // loop_pre_header
    _
  $region3: #{auv_forward.1} parent=0 // loop_header
    %s15 = sphi 0, %s19
    %p16 = scmp.ge.s32.totalorder %s15, 10
    %s22 = sphi 0, %s34
    %s23 = sphi 0, %s30
    %s24 = sphi 0, %s22
    %s25 = sphi 0, %s23
    %s26 = sphi 0, %s24
    %s27 = sphi 0, %s25
    %s37 = sphi 0, %s39
    %s40 = sphi 0, %s37
    %s41 = sphi 0, %s40
    %s57 = sphi 0, %s41
    %s63 = sphi 0, %s65
    %s66 = sphi 0, %s63
    %s67 = sphi 0, %s66
    %s83 = sphi 0, %s67
    %s89 = sphi 0, %s91
    %s92 = sphi 0, %s89
    %s93 = sphi 0, %s92
    %s109 = sphi 0, %s93
    %s115 = sphi 0, %s117
    %s118 = sphi 0, %s115
    %s119 = sphi 0, %s118
    %s135 = sphi 0, %s119
    %s139 = sphi 0, %s139
    %s141 = sphi 0, %s139
    %s142 = sphi 0, %s141
    %s156 = sphi 0, %s142
    %s160 = sphi 0, %s160
    %s162 = sphi 0, %s160
    %s163 = sphi 0, %s162
    %s177 = sphi 0, %s163
    %s181 = sphi 0, %s181
    %s183 = sphi 0, %s181
    %s184 = sphi 0, %s183
    %s198 = sphi 0, %s184
    %s202 = sphi 0, %s202
    %s204 = sphi 0, %s202
    %s205 = sphi 0, %s204
    %s219 = sphi 0, %s205
    %s225 = sphi 0, %s227
    %s228 = sphi 0, %s225
    %s229 = sphi 0, %s228
    %s245 = sphi 0, %s229
    %s253 = sphi 0, %s255
    %s256 = sphi 0, %s253
    %s257 = sphi 0, %s256
    %s273 = sphi 0, %s257
  $region4: #{auv_forward.1} parent=0 // loop_header_branch
    %18 = sbr.rel (%p16) target = $region8
  $region5: #{auv_forward.1} parent=0 // loop_body
    %s20 = ssub.s32 %s15, 1
    %s21 = ssub.s32 %s15, 2
    %s28 = sadd.s32 1, %s23
    %p29 = scmp.ge.s32.totalorder %s28, 2
    %s30 = scalar_select %p29, 0, %s28
    %s31 = sadd.s32 1, %s22
    %s32 = scalar_select %p29, %s31, %s22
    %p33 = scmp.ge.s32.totalorder %s32, 4
    %s34 = scalar_select %p33, 0, %s32
    %s35 = ssub.s32 %s23, %s30
    %p36 = scmp.eq.s32.totalorder %s35, 0
    %s38 = sadd.s32 %s37, 1
    %s39 = scalar_select %p36, %s37, %s38
    %p42 = pneg %p36
    %p43 = scmp.eq.s32.totalorder %s15, 7
    %p44 = por %p42, %p43
    %p45 = scmp.ne.s32.totalorder %s37, %s40
    %p46 = scmp.eq.s32.totalorder %s15, 0
    %p47 = por %p45, %p46
    %p48 = scmp.ne.s32.totalorder %s37, %s40
    %p49 = scmp.eq.s32.totalorder %s20, 7
    %p50 = por %p48, %p49
    %p51 = scmp.ne.s32.totalorder %s40, %s41
    %p52 = scmp.eq.s32.totalorder %s20, 0
    %p53 = por %p51, %p52
    %p54 = scmp.ne.s32.totalorder %s40, %s41
    %p55 = scmp.eq.s32.totalorder %s21, 7
    %p56 = por %p54, %p55
    %p58 = scmp.ne.s32.totalorder %s41, %s57
    %p59 = scmp.eq.s32.totalorder %s21, 0
    %p60 = por %p58, %p59
    %s61 = ssub.s32 %s23, %s30
    %p62 = scmp.eq.s32.totalorder %s61, 0
    %s64 = sadd.s32 %s63, 1
    %s65 = scalar_select %p62, %s63, %s64
    %p68 = pneg %p62
    %p69 = scmp.eq.s32.totalorder %s15, 7
    %p70 = por %p68, %p69
    %p71 = scmp.ne.s32.totalorder %s63, %s66
    %p72 = scmp.eq.s32.totalorder %s15, 0
    %p73 = por %p71, %p72
    %p74 = scmp.ne.s32.totalorder %s63, %s66
    %p75 = scmp.eq.s32.totalorder %s20, 7
    %p76 = por %p74, %p75
    %p77 = scmp.ne.s32.totalorder %s66, %s67
    %p78 = scmp.eq.s32.totalorder %s20, 0
    %p79 = por %p77, %p78
    %p80 = scmp.ne.s32.totalorder %s66, %s67
    %p81 = scmp.eq.s32.totalorder %s21, 7
    %p82 = por %p80, %p81
    %p84 = scmp.ne.s32.totalorder %s67, %s83
    %p85 = scmp.eq.s32.totalorder %s21, 0
    %p86 = por %p84, %p85
    %s87 = ssub.s32 %s22, %s34
    %p88 = scmp.eq.s32.totalorder %s87, 0
    %s90 = sadd.s32 %s89, 1
    %s91 = scalar_select %p88, %s89, %s90
    %p94 = pneg %p88
    %p95 = scmp.eq.s32.totalorder %s15, 7
    %p96 = por %p94, %p95
    %p97 = scmp.ne.s32.totalorder %s89, %s92
    %p98 = scmp.eq.s32.totalorder %s15, 0
    %p99 = por %p97, %p98
    %p100 = scmp.ne.s32.totalorder %s89, %s92
    %p101 = scmp.eq.s32.totalorder %s20, 7
    %p102 = por %p100, %p101
    %p103 = scmp.ne.s32.totalorder %s92, %s93
    %p104 = scmp.eq.s32.totalorder %s20, 0
    %p105 = por %p103, %p104
    %p106 = scmp.ne.s32.totalorder %s92, %s93
    %p107 = scmp.eq.s32.totalorder %s21, 7
    %p108 = por %p106, %p107
    %p110 = scmp.ne.s32.totalorder %s93, %s109
    %p111 = scmp.eq.s32.totalorder %s21, 0
    %p112 = por %p110, %p111
    %s113 = ssub.s32 %s22, %s34
    %p114 = scmp.eq.s32.totalorder %s113, 0
    %s116 = sadd.s32 %s115, 1
    %s117 = scalar_select %p114, %s115, %s116
    %p120 = pneg %p114
    %p121 = scmp.eq.s32.totalorder %s15, 7
    %p122 = por %p120, %p121
    %p123 = scmp.ne.s32.totalorder %s115, %s118
    %p124 = scmp.eq.s32.totalorder %s15, 0
    %p125 = por %p123, %p124
    %p126 = scmp.ne.s32.totalorder %s115, %s118
    %p127 = scmp.eq.s32.totalorder %s20, 7
    %p128 = por %p126, %p127
    %p129 = scmp.ne.s32.totalorder %s118, %s119
    %p130 = scmp.eq.s32.totalorder %s20, 0
    %p131 = por %p129, %p130
    %p132 = scmp.ne.s32.totalorder %s118, %s119
    %p133 = scmp.eq.s32.totalorder %s21, 7
    %p134 = por %p132, %p133
    %p136 = scmp.ne.s32.totalorder %s119, %s135
    %p137 = scmp.eq.s32.totalorder %s21, 0
    %p138 = por %p136, %p137
    %s140 = sadd.s32 %s139, 1
    %p143 = scmp.eq.s32.totalorder %s15, 7
    %p144 = scmp.ne.s32.totalorder %s139, %s141
    %p145 = scmp.eq.s32.totalorder %s15, 0
    %p146 = por %p144, %p145
    %p147 = scmp.ne.s32.totalorder %s139, %s141
    %p148 = scmp.eq.s32.totalorder %s20, 7
    %p149 = por %p147, %p148
    %p150 = scmp.ne.s32.totalorder %s141, %s142
    %p151 = scmp.eq.s32.totalorder %s20, 0
    %p152 = por %p150, %p151
    %p153 = scmp.ne.s32.totalorder %s141, %s142
    %p154 = scmp.eq.s32.totalorder %s21, 7
    %p155 = por %p153, %p154
    %p157 = scmp.ne.s32.totalorder %s142, %s156
    %p158 = scmp.eq.s32.totalorder %s21, 0
    %p159 = por %p157, %p158
    %s161 = sadd.s32 %s160, 1
    %p164 = scmp.eq.s32.totalorder %s15, 7
    %p165 = scmp.ne.s32.totalorder %s160, %s162
    %p166 = scmp.eq.s32.totalorder %s15, 0
    %p167 = por %p165, %p166
    %p168 = scmp.ne.s32.totalorder %s160, %s162
    %p169 = scmp.eq.s32.totalorder %s20, 7
    %p170 = por %p168, %p169
    %p171 = scmp.ne.s32.totalorder %s162, %s163
    %p172 = scmp.eq.s32.totalorder %s20, 0
    %p173 = por %p171, %p172
    %p174 = scmp.ne.s32.totalorder %s162, %s163
    %p175 = scmp.eq.s32.totalorder %s21, 7
    %p176 = por %p174, %p175
    %p178 = scmp.ne.s32.totalorder %s163, %s177
    %p179 = scmp.eq.s32.totalorder %s21, 0
    %p180 = por %p178, %p179
    %s182 = sadd.s32 %s181, 1
    %p185 = scmp.eq.s32.totalorder %s15, 7
    %p186 = scmp.ne.s32.totalorder %s181, %s183
    %p187 = scmp.eq.s32.totalorder %s15, 0
    %p188 = por %p186, %p187
    %p189 = scmp.ne.s32.totalorder %s181, %s183
    %p190 = scmp.eq.s32.totalorder %s20, 7
    %p191 = por %p189, %p190
    %p192 = scmp.ne.s32.totalorder %s183, %s184
    %p193 = scmp.eq.s32.totalorder %s20, 0
    %p194 = por %p192, %p193
    %p195 = scmp.ne.s32.totalorder %s183, %s184
    %p196 = scmp.eq.s32.totalorder %s21, 7
    %p197 = por %p195, %p196
    %p199 = scmp.ne.s32.totalorder %s184, %s198
    %p200 = scmp.eq.s32.totalorder %s21, 0
    %p201 = por %p199, %p200
    %s203 = sadd.s32 %s202, 1
    %p206 = scmp.eq.s32.totalorder %s15, 7
    %p207 = scmp.ne.s32.totalorder %s202, %s204
    %p208 = scmp.eq.s32.totalorder %s15, 0
    %p209 = por %p207, %p208
    %p210 = scmp.ne.s32.totalorder %s202, %s204
    %p211 = scmp.eq.s32.totalorder %s20, 7
    %p212 = por %p210, %p211
    %p213 = scmp.ne.s32.totalorder %s204, %s205
    %p214 = scmp.eq.s32.totalorder %s20, 0
    %p215 = por %p213, %p214
    %p216 = scmp.ne.s32.totalorder %s204, %s205
    %p217 = scmp.eq.s32.totalorder %s21, 7
    %p218 = por %p216, %p217
    %p220 = scmp.ne.s32.totalorder %s205, %s219
    %p221 = scmp.eq.s32.totalorder %s21, 0
    %p222 = por %p220, %p221
    %s223 = ssub.s32 %s23, %s30
    %p224 = scmp.eq.s32.totalorder %s223, 0
    %s226 = sadd.s32 %s225, 1
    %s227 = scalar_select %p224, %s225, %s226
    %p230 = pneg %p224
    %p231 = scmp.eq.s32.totalorder %s15, 7
    %p232 = por %p230, %p231
    %p233 = scmp.ne.s32.totalorder %s225, %s228
    %p234 = scmp.eq.s32.totalorder %s15, 0
    %p235 = por %p233, %p234
    %p236 = scmp.ne.s32.totalorder %s225, %s228
    %p237 = scmp.eq.s32.totalorder %s20, 7
    %p238 = por %p236, %p237
    %p239 = scmp.ne.s32.totalorder %s228, %s229
    %p240 = scmp.eq.s32.totalorder %s20, 0
    %p241 = por %p239, %p240
    %p242 = scmp.ne.s32.totalorder %s228, %s229
    %p243 = scmp.eq.s32.totalorder %s21, 7
    %p244 = por %p242, %p243
    %p246 = scmp.ne.s32.totalorder %s229, %s245
    %p247 = scmp.eq.s32.totalorder %s21, 0
    %p248 = por %p246, %p247
    %s249 = ssub.s32 %s22, %s34
    %s250 = ssub.s32 %s23, %s30
    %s251 = sor.u32 %s249, %s250
    %p252 = scmp.eq.s32.totalorder %s251, 0
    %s254 = sadd.s32 %s253, 1
    %s255 = scalar_select %p252, %s253, %s254
    %p258 = pneg %p252
    %p259 = scmp.eq.s32.totalorder %s15, 7
    %p260 = por %p258, %p259
    %p261 = scmp.ne.s32.totalorder %s253, %s256
    %p262 = scmp.eq.s32.totalorder %s15, 0
    %p263 = por %p261, %p262
    %p264 = scmp.ne.s32.totalorder %s253, %s256
    %p265 = scmp.eq.s32.totalorder %s20, 7
    %p266 = por %p264, %p265
    %p267 = scmp.ne.s32.totalorder %s256, %s257
    %p268 = scmp.eq.s32.totalorder %s20, 0
    %p269 = por %p267, %p268
    %p270 = scmp.ne.s32.totalorder %s256, %s257
    %p271 = scmp.eq.s32.totalorder %s21, 7
    %p272 = por %p270, %p271
    %p274 = scmp.ne.s32.totalorder %s257, %s273
    %p275 = scmp.eq.s32.totalorder %s21, 0
    %p276 = por %p274, %p275
    %p277 = scmp.le.s32.totalorder 1, %s15
    %p278 = scmp.lt.s32.totalorder %s15, 9
    %p279 = pnand %p277, %p278
    %p280 = pneg %p279
    // Predicated region
    $region9: #{auv_forward.1} parent=5 // pred_check
      _
    $region10: #{auv_forward.1} parent=5 // pred_check_branch
      %282 = sbr.rel (%p279) target = $region12
    $region11: #{auv_forward.1} parent=5 // pred_region
      %s283 = ssub.s32 %s15, 1
      // Predicated region
      $region13: #{auv_forward.1} parent=11 // pred_check
        %p284 = pneg %p152
      $region14: #{auv_forward.1} parent=11 // pred_check_branch
        %286 = sbr.rel (%p284) target = $region16
      $region15: #{auv_forward.1} parent=11 // pred_region
        _
      $region16: #{auv_forward.1} parent=11 // pred_fallthru
        _
      // Predicated region
      $region17: #{auv_forward.1} parent=11 // pred_check
        %p287 = pneg %p173
      $region18: #{auv_forward.1} parent=11 // pred_check_branch
        %289 = sbr.rel (%p287) target = $region20
      $region19: #{auv_forward.1} parent=11 // pred_region
        _
      $region20: #{auv_forward.1} parent=11 // pred_fallthru
        _
      // Predicated region
      $region21: #{auv_forward.1} parent=11 // pred_check
        %p290 = pneg %p194
      $region22: #{auv_forward.1} parent=11 // pred_check_branch
        %292 = sbr.rel (%p290) target = $region24
      $region23: #{auv_forward.1} parent=11 // pred_region
        _
      $region24: #{auv_forward.1} parent=11 // pred_fallthru
        _
      // Predicated region
      $region25: #{auv_forward.1} parent=11 // pred_check
        %p293 = pneg %p215
      $region26: #{auv_forward.1} parent=11 // pred_check_branch
        %295 = sbr.rel (%p293) target = $region28
      $region27: #{auv_forward.1} parent=11 // pred_region
        _
      $region28: #{auv_forward.1} parent=11 // pred_fallthru
        _
    $region12: #{auv_forward.1} parent=5 // pred_fallthru
      _
    %p296 = scmp.lt.s32.totalorder %s15, 8
    // Predicated region
    $region29: #{auv_forward.1} parent=5 // pred_check
      %p297 = pneg %p296
    $region30: #{auv_forward.1} parent=5 // pred_check_branch
      %299 = sbr.rel (%p297) target = $region32
    $region31: #{auv_forward.1} parent=5 // pred_region
      // Predicated region
      $region33: #{auv_forward.1} parent=31 // pred_check
        %p300 = pneg %p47
      $region34: #{auv_forward.1} parent=31 // pred_check_branch
        %302 = sbr.rel (%p300) target = $region36
      $region35: #{auv_forward.1} parent=31 // pred_region
        %s303 = smul.u32 6, %s23
        %p304 = scmp.lt.s32.totalorder %s303, 11
        %s305 = scalar_select %p304, %s303, 11
        %s306 = smul.addr %s305, 2
        %s307 = smul.addr %s306, 8
        %s308 = scalar_lea.vmem %s0, %s307
        %s309 = smul.u32 6, %s23
      $region36: #{auv_forward.1} parent=31 // pred_fallthru
        _
      // Predicated region
      $region37: #{auv_forward.1} parent=31 // pred_check
        %p310 = pneg %p73
      $region38: #{auv_forward.1} parent=31 // pred_check_branch
        %312 = sbr.rel (%p310) target = $region40
      $region39: #{auv_forward.1} parent=31 // pred_region
        %s313 = smul.u32 6, %s23
        %p314 = scmp.lt.s32.totalorder %s313, 11
        %s315 = scalar_select %p314, %s313, 11
        %s316 = smul.addr %s315, 2
        %s317 = smul.addr %s316, 8
        %s318 = scalar_lea.vmem %s1, %s317
        %s319 = smul.u32 6, %s23
      $region40: #{auv_forward.1} parent=31 // pred_fallthru
        _
      // Predicated region
      $region41: #{auv_forward.1} parent=31 // pred_check
        %p320 = pneg %p99
      $region42: #{auv_forward.1} parent=31 // pred_check_branch
        %322 = sbr.rel (%p320) target = $region44
      $region43: #{auv_forward.1} parent=31 // pred_region
        %p323 = scmp.lt.s32.totalorder %s22, 3
        %s324 = scalar_select %p323, %s22, 3
        %s325 = smul.addr %s324, 2
        %s326 = smul.addr %s325, 8
        %s327 = scalar_lea.vmem %s2, %s326
      $region44: #{auv_forward.1} parent=31 // pred_fallthru
        _
      // Predicated region
      $region45: #{auv_forward.1} parent=31 // pred_check
        %p328 = pneg %p125
      $region46: #{auv_forward.1} parent=31 // pred_check_branch
        %330 = sbr.rel (%p328) target = $region48
      $region47: #{auv_forward.1} parent=31 // pred_region
        %p331 = scmp.lt.s32.totalorder %s22, 3
        %s332 = scalar_select %p331, %s22, 3
        %s333 = smul.addr %s332, 2
        %s334 = smul.addr %s333, 8
        %s335 = scalar_lea.vmem %s3, %s334
      $region48: #{auv_forward.1} parent=31 // pred_fallthru
        _
      // Predicated region
      $region49: #{auv_forward.1} parent=31 // pred_check
        %p336 = pneg %p235
      $region50: #{auv_forward.1} parent=31 // pred_check_branch
        %338 = sbr.rel (%p336) target = $region52
      $region51: #{auv_forward.1} parent=31 // pred_region
        %s339 = smul.u32 12, %s23
        %p340 = scmp.lt.s32.totalorder %s339, 23
        %s341 = scalar_select %p340, %s339, 23
        %s342 = smul.addr %s341, 8
        %s343 = scalar_lea.vmem %s8, %s342
        %s344 = smul.u32 12, %s23
      $region52: #{auv_forward.1} parent=31 // pred_fallthru
        _
    $region32: #{auv_forward.1} parent=5 // pred_fallthru
      _
    %p345 = scmp.le.s32.totalorder 1, %s15
    %p346 = scmp.lt.s32.totalorder %s15, 9
    %p347 = pnand %p345, %p346
    %p348 = pneg %p347
    // Predicated region
    $region53: #{auv_forward.1} parent=5 // pred_check
      _
    $region54: #{auv_forward.1} parent=5 // pred_check_branch
      %350 = sbr.rel (%p347) target = $region56
    $region55: #{auv_forward.1} parent=5 // pred_region
      %s351 = ssub.s32 %s15, 1
      %s352 = smul.u32 6, %s25
      %p353 = scmp.lt.s32.totalorder %s352, 11
      %s354 = scalar_select %p353, %s352, 11
      %s355 = smul.addr %s354, 2
      %s356 = smul.addr %s355, 8
      %s357 = scalar_lea.vmem %s0, %s356
      %p358 = pneg %p53
      %p359 = pneg %p50
      %s360 = smul.u32 6, %s25
      %p361 = scmp.lt.s32.totalorder %s360, 11
      %s362 = scalar_select %p361, %s360, 11
      %s363 = smul.addr %s362, 2
      %s364 = smul.addr %s363, 8
      %s365 = scalar_lea.vmem %s1, %s364
      %p366 = pneg %p79
      %p367 = pneg %p76
      %p368 = scmp.lt.s32.totalorder %s24, 3
      %s369 = scalar_select %p368, %s24, 3
      %s370 = smul.addr %s369, 2
      %s371 = smul.addr %s370, 8
      %s372 = scalar_lea.vmem %s2, %s371
      %p373 = pneg %p105
      %p374 = pneg %p102
      %p375 = scmp.lt.s32.totalorder %s24, 3
      %s376 = scalar_select %p375, %s24, 3
      %s377 = smul.addr %s376, 2
      %s378 = smul.addr %s377, 8
      %s379 = scalar_lea.vmem %s3, %s378
      %p380 = pneg %p131
      %p381 = pneg %p128
      %p382 = pneg %p152
      %p383 = pneg %p149
      %p384 = pneg %p173
      %p385 = pneg %p170
      %p386 = pneg %p194
      %p387 = pneg %p191
      %p388 = pneg %p215
      %p389 = pneg %p212
      %s390 = smul.u32 12, %s25
      %p391 = scmp.lt.s32.totalorder %s390, 23
      %s392 = scalar_select %p391, %s390, 23
      %s393 = smul.addr %s392, 8
      %s394 = scalar_lea.vmem %s8, %s393
      %p395 = pneg %p241
      %p396 = pneg %p238
      %p397 = pneg %p269
      %p398 = pneg %p266
      %s399 = smul.u32 12, %s25
      %p400 = scmp.lt.s32.totalorder %s24, 3
      %s401 = scalar_select %p400, %s24, 3
      %p402 = scmp.lt.s32.totalorder %s399, 23
      %s403 = scalar_select %p402, %s399, 23
      %s404 = smul.addr %s401, 24
      %s405 = sadd.s32 %s403, %s404
      %s406 = smul.addr %s405, 8
      %s407 = scalar_lea.vmem %s9, %s406
      %s408 = smul.u32 6, %s25
      %p409 = scmp.lt.s32.totalorder %s408, 11
      %s410 = scalar_select %p409, %s408, 11
      %s411 = smul.addr %s410, 2
      %s412 = smul.addr %s411, 8
      %s413 = scalar_lea.vmem %s0, %s412
      %s414 = smul.u32 6, %s25
      %s415 = smul.u32 6, %s25
      %p416 = scmp.lt.s32.totalorder %s415, 11
      %s417 = scalar_select %p416, %s415, 11
      %s418 = smul.addr %s417, 2
      %s419 = smul.addr %s418, 8
      %s420 = scalar_lea.vmem %s1, %s419
      %s421 = smul.u32 6, %s25
      %p422 = scmp.lt.s32.totalorder %s24, 3
      %s423 = scalar_select %p422, %s24, 3
      %s424 = smul.addr %s423, 2
      %s425 = smul.addr %s424, 8
      %s426 = scalar_lea.vmem %s2, %s425
      %p427 = scmp.lt.s32.totalorder %s24, 3
      %s428 = scalar_select %p427, %s24, 3
      %s429 = smul.addr %s428, 2
      %s430 = smul.addr %s429, 8
      %s431 = scalar_lea.vmem %s3, %s430
      %s432 = smul.u32 12, %s25
      %p433 = scmp.lt.s32.totalorder %s432, 23
      %s434 = scalar_select %p433, %s432, 23
      %s435 = smul.addr %s434, 8
      %s436 = scalar_lea.vmem %s8, %s435
      %s437 = smul.u32 12, %s25
      %s438 = smul.u32 12, %s25
      %p439 = scmp.lt.s32.totalorder %s24, 3
      %s440 = scalar_select %p439, %s24, 3
      %p441 = scmp.lt.s32.totalorder %s438, 23
      %s442 = scalar_select %p441, %s438, 23
      %s443 = smul.addr %s440, 24
      %s444 = sadd.s32 %s442, %s443
      %s445 = smul.addr %s444, 8
      %s446 = scalar_lea.vmem %s9, %s445
      %s447 = smul.u32 12, %s25
      %v448 = vld [vmem:[%s426] sm:$0xff]
      %v449 = vld [vmem:[%s426 + $0x8] sm:$0xff]
      %v450 = vld [vmem:[%s431] sm:$0xff]
      %v451 = vld [vmem:[%s431 + $0x8] sm:$0xff]
      %v452 = vld [vmem:[%s413] sm:$0xff]
      %v453 = vld [vmem:[%s413 + $0x8] sm:$0xff]
      %v454 = vld [vmem:[%s413 + $0x10] sm:$0xff]
      %v455 = vld [vmem:[%s413 + $0x18] sm:$0xff]
      %v456 = vld [vmem:[%s413 + $0x20] sm:$0xff]
      %v457 = vld [vmem:[%s413 + $0x28] sm:$0xff]
      %v458 = vld [vmem:[%s413 + $0x30] sm:$0xff]
      %v459 = vld [vmem:[%s413 + $0x38] sm:$0xff]
      %v460 = vld [vmem:[%s413 + $0x40] sm:$0xff]
      %v461 = vld [vmem:[%s413 + $0x48] sm:$0xff]
      %v462 = vld [vmem:[%s413 + $0x50] sm:$0xff]
      %v463 = vld [vmem:[%s413 + $0x58] sm:$0xff]
      %v464 = vld [vmem:[%s420] sm:$0xff]
      %v465 = vld [vmem:[%s420 + $0x8] sm:$0xff]
      %v466 = vld [vmem:[%s420 + $0x10] sm:$0xff]
      %v467 = vld [vmem:[%s420 + $0x18] sm:$0xff]
      %v468 = vld [vmem:[%s420 + $0x20] sm:$0xff]
      %v469 = vld [vmem:[%s420 + $0x28] sm:$0xff]
      %v470 = vld [vmem:[%s420 + $0x30] sm:$0xff]
      %v471 = vld [vmem:[%s420 + $0x38] sm:$0xff]
      %v472 = vld [vmem:[%s420 + $0x40] sm:$0xff]
      %v473 = vld [vmem:[%s420 + $0x48] sm:$0xff]
      %v474 = vld [vmem:[%s420 + $0x50] sm:$0xff]
      %v475 = vld [vmem:[%s420 + $0x58] sm:$0xff]
      %v476 = vmul.f32 %v452, %v448
      %v477 = vmul.f32 %v453, %v449
      %v478 = vmul.f32 %v454, %v448
      %v479 = vmul.f32 %v455, %v449
      %v480 = vmul.f32 %v456, %v448
      %v481 = vmul.f32 %v457, %v449
      %v482 = vmul.f32 %v458, %v448
      %v483 = vmul.f32 %v459, %v449
      %v484 = vmul.f32 %v460, %v448
      %v485 = vmul.f32 %v461, %v449
      %v486 = vmul.f32 %v462, %v448
      %v487 = vmul.f32 %v463, %v449
      %v488 = vmul.f32 %v464, %v450
      %v489 = vmul.f32 %v465, %v451
      %v490 = vmul.f32 %v466, %v450
      %v491 = vmul.f32 %v467, %v451
      %v492 = vmul.f32 %v468, %v450
      %v493 = vmul.f32 %v469, %v451
      %v494 = vmul.f32 %v470, %v450
      %v495 = vmul.f32 %v471, %v451
      %v496 = vmul.f32 %v472, %v450
      %v497 = vmul.f32 %v473, %v451
      %v498 = vmul.f32 %v474, %v450
      %v499 = vmul.f32 %v475, %v451
      %v500 = vsub.f32 %v476, %v488
      %v501 = vsub.f32 %v477, %v489
      %v502 = vsub.f32 %v478, %v490
      %v503 = vsub.f32 %v479, %v491
      %v504 = vsub.f32 %v480, %v492
      %v505 = vsub.f32 %v481, %v493
      %v506 = vsub.f32 %v482, %v494
      %v507 = vsub.f32 %v483, %v495
      %v508 = vsub.f32 %v484, %v496
      %v509 = vsub.f32 %v485, %v497
      %v510 = vsub.f32 %v486, %v498
      %v511 = vsub.f32 %v487, %v499
      %v512 = vmul.f32 %v452, %v450
      %v513 = vmul.f32 %v453, %v451
      %v514 = vmul.f32 %v454, %v450
      %v515 = vmul.f32 %v455, %v451
      %v516 = vmul.f32 %v456, %v450
      %v517 = vmul.f32 %v457, %v451
      %v518 = vmul.f32 %v458, %v450
      %v519 = vmul.f32 %v459, %v451
      %v520 = vmul.f32 %v460, %v450
      %v521 = vmul.f32 %v461, %v451
      %v522 = vmul.f32 %v462, %v450
      %v523 = vmul.f32 %v463, %v451
      %v524 = vmul.f32 %v464, %v448
      %v525 = vmul.f32 %v465, %v449
      %v526 = vmul.f32 %v466, %v448
      %v527 = vmul.f32 %v467, %v449
      %v528 = vmul.f32 %v468, %v448
      %v529 = vmul.f32 %v469, %v449
      %v530 = vmul.f32 %v470, %v448
      %v531 = vmul.f32 %v471, %v449
      %v532 = vmul.f32 %v472, %v448
      %v533 = vmul.f32 %v473, %v449
      %v534 = vmul.f32 %v474, %v448
      %v535 = vmul.f32 %v475, %v449
      %v536 = vadd.f32 %v512, %v524
      %v537 = vadd.f32 %v513, %v525
      %v538 = vadd.f32 %v514, %v526
      %v539 = vadd.f32 %v515, %v527
      %v540 = vadd.f32 %v516, %v528
      %v541 = vadd.f32 %v517, %v529
      %v542 = vadd.f32 %v518, %v530
      %v543 = vadd.f32 %v519, %v531
      %v544 = vadd.f32 %v520, %v532
      %v545 = vadd.f32 %v521, %v533
      %v546 = vadd.f32 %v522, %v534
      %v547 = vadd.f32 %v523, %v535
      %v548 = vld [vmem:[%s4] sm:$0xff]
      %v549 = vld [vmem:[%s4 + $0x8] sm:$0xff]
      %v550 = vld [vmem:[%s5] sm:$0xff]
      %v551 = vld [vmem:[%s5 + $0x8] sm:$0xff]
      %v552 = vadd.f32 %v548, %v550
      %v553 = vadd.f32 %v549, %v551
      %v554 = vadd.f32 %v500, %v536
      %v555 = vadd.f32 %v501, %v537
      %v556 = vadd.f32 %v502, %v538
      %v557 = vadd.f32 %v503, %v539
      %v558 = vadd.f32 %v504, %v540
      %v559 = vadd.f32 %v505, %v541
      %v560 = vadd.f32 %v506, %v542
      %v561 = vadd.f32 %v507, %v543
      %v562 = vadd.f32 %v508, %v544
      %v563 = vadd.f32 %v509, %v545
      %v564 = vadd.f32 %v510, %v546
      %v565 = vadd.f32 %v511, %v547
      %vm566 = vcmask 130048
      %v568 = vsel %vm566, %v548, 0
      %v571 = vsel %vm566, %v549, 0
      %573 = vmatprep.subr.mxu0 0.0
      %574 = vmatpush1.msra.mxu0 %v500
      %575 = vmatprep.subr.mxu0 0.0
      %576 = vmatpush1.msra.mxu0 %v501
      %577 = vmatprep.subr.mxu0 0.0
      %578 = vmatpush1.msra.mxu0 0.0
      %579 = vmatprep.subr.mxu0 0.0
      %580 = vmatpush1.msra.mxu0 0.0
      %581 = vmatprep.subr.mxu0 0.0
      %582 = vmatpush1.msra.mxu0 0.0
      %583 = vmatprep.subr.mxu0 0.0
      %584 = vmatpush1.msra.mxu0 0.0
      %585 = vmatprep.subr.mxu0 0.0
      %586 = vmatpush1.msra.mxu0 0.0
      %587 = vmatprep.subr.mxu0 0.0
      %588 = vmatpush1.msra.mxu0 0.0
      %589 = vmatprep.subr.mxu0 0.0
      %590 = vmatpush1.msra.mxu0 0.0
      %591 = vmatprep.subr.mxu0 0.0
      %592 = vmatpush1.msra.mxu0 0.0
      %593 = vmatprep.subr.mxu0 0.0
      %594 = vmatpush1.msra.mxu0 0.0
      %595 = vmatprep.subr.mxu0 0.0
      %596 = vmatpush1.msra.mxu0 0.0
      %597 = vmatprep.subr.mxu0 0.0
      %598 = vmatpush1.msra.mxu0 0.0
      %599 = vmatprep.subr.mxu0 0.0
      %600 = vmatpush1.msra.mxu0 0.0
      %601 = vmatprep.subr.mxu0 0.0
      %602 = vmatpush1.msra.mxu0 0.0
      %603 = vmatprep.subr.mxu0 0.0
      %604 = vmatpush1.msra.mxu0 0.0
      %605 = vmatprep.subr.mxu0 0.0
      %606 = vmatpush1.msra.mxu0 0.0
      %607 = vmatprep.subr.mxu0 0.0
      %608 = vmatpush1.msra.mxu0 0.0
      %609 = vmatprep.subr.mxu0 0.0
      %610 = vmatpush1.msra.mxu0 0.0
      %611 = vmatprep.subr.mxu0 0.0
      %612 = vmatpush1.msra.mxu0 0.0
      %613 = vmatprep.subr.mxu0 0.0
      %614 = vmatpush1.msra.mxu0 0.0
      %615 = vmatprep.subr.mxu0 0.0
      %616 = vmatpush1.msra.mxu0 0.0
      %617 = vmatprep.subr.mxu0 0.0
      %618 = vmatpush1.msra.mxu0 0.0
      %619 = vmatprep.subr.mxu0 0.0
      %620 = vmatpush1.msra.mxu0 0.0
      %621 = vmatprep.subr.mxu0 0.0
      %622 = vmatpush1.msra.mxu0 0.0
      %623 = vmatprep.subr.mxu0 0.0
      %624 = vmatpush1.msra.mxu0 0.0
      %625 = vmatprep.subr.mxu0 0.0
      %626 = vmatpush1.msra.mxu0 0.0
      %627 = vmatprep.subr.mxu0 0.0
      %628 = vmatpush1.msra.mxu0 0.0
      %629 = vmatprep.subr.mxu0 0.0
      %630 = vmatpush1.msra.mxu0 0.0
      %631 = vmatprep.subr.mxu0 0.0
      %632 = vmatpush1.msra.mxu0 0.0
      %633 = vmatprep.subr.mxu0 0.0
      %634 = vmatpush1.msra.mxu0 0.0
      %635 = vmatprep.subr.mxu0 0.0
      %636 = vmatpush1.msra.mxu0 0.0
      %637 = vmatprep.mubr.f32.mxu0 0.0
      %638 = vmatmul.mubr.f32.gmra.mrb[0].mxu0 %v568
      %v639 = vpop.f32.mrb[0].mxu0
      %v640 = vadd.f32 0.0, %v639
      %v641 = vpop.f32.mrb[0].mxu0
      %642 = vmatprep.mubr.f32.mxu0 0.0
      %643 = vmatmul.mubr.f32.gmra.mrb[0].mxu0 %v571
      %v644 = vpop.f32.mrb[0].mxu0
      %v645 = vadd.f32 0.0, %v644
      %v646 = vpop.f32.mrb[0].mxu0
      %647 = vdwg.mxu0
      %648 = vmatprep.subr.mxu0 0.0
      %649 = vmatpush1.msra.mxu0 %v502
      %650 = vmatprep.subr.mxu0 0.0
      %651 = vmatpush1.msra.mxu0 %v503
      %652 = vmatprep.subr.mxu0 0.0
      %653 = vmatpush1.msra.mxu0 0.0
      %654 = vmatprep.subr.mxu0 0.0
      %655 = vmatpush1.msra.mxu0 0.0
      %656 = vmatprep.subr.mxu0 0.0
      %657 = vmatpush1.msra.mxu0 0.0
      %658 = vmatprep.subr.mxu0 0.0
      %659 = vmatpush1.msra.mxu0 0.0
      %660 = vmatprep.subr.mxu0 0.0
      %661 = vmatpush1.msra.mxu0 0.0
      %662 = vmatprep.subr.mxu0 0.0
      %663 = vmatpush1.msra.mxu0 0.0
      %664 = vmatprep.subr.mxu0 0.0
      %665 = vmatpush1.msra.mxu0 0.0
      %666 = vmatprep.subr.mxu0 0.0
      %667 = vmatpush1.msra.mxu0 0.0
      %668 = vmatprep.subr.mxu0 0.0
      %669 = vmatpush1.msra.mxu0 0.0
      %670 = vmatprep.subr.mxu0 0.0
      %671 = vmatpush1.msra.mxu0 0.0
      %672 = vmatprep.subr.mxu0 0.0
      %673 = vmatpush1.msra.mxu0 0.0
      %674 = vmatprep.subr.mxu0 0.0
      %675 = vmatpush1.msra.mxu0 0.0
      %676 = vmatprep.subr.mxu0 0.0
      %677 = vmatpush1.msra.mxu0 0.0
      %678 = vmatprep.subr.mxu0 0.0
      %679 = vmatpush1.msra.mxu0 0.0
      %680 = vmatprep.subr.mxu0 0.0
      %681 = vmatpush1.msra.mxu0 0.0
      %682 = vmatprep.subr.mxu0 0.0
      %683 = vmatpush1.msra.mxu0 0.0
      %684 = vmatprep.subr.mxu0 0.0
      %685 = vmatpush1.msra.mxu0 0.0
      %686 = vmatprep.subr.mxu0 0.0
      %687 = vmatpush1.msra.mxu0 0.0
      %688 = vmatprep.subr.mxu0 0.0
      %689 = vmatpush1.msra.mxu0 0.0
      %690 = vmatprep.subr.mxu0 0.0
      %691 = vmatpush1.msra.mxu0 0.0
      %692 = vmatprep.subr.mxu0 0.0
      %693 = vmatpush1.msra.mxu0 0.0
      %694 = vmatprep.subr.mxu0 0.0
      %695 = vmatpush1.msra.mxu0 0.0
      %696 = vmatprep.subr.mxu0 0.0
      %697 = vmatpush1.msra.mxu0 0.0
      %698 = vmatprep.subr.mxu0 0.0
      %699 = vmatpush1.msra.mxu0 0.0
      %700 = vmatprep.subr.mxu0 0.0
      %701 = vmatpush1.msra.mxu0 0.0
      %702 = vmatprep.subr.mxu0 0.0
      %703 = vmatpush1.msra.mxu0 0.0
      %704 = vmatprep.subr.mxu0 0.0
      %705 = vmatpush1.msra.mxu0 0.0
      %706 = vmatprep.subr.mxu0 0.0
      %707 = vmatpush1.msra.mxu0 0.0
      %708 = vmatprep.subr.mxu0 0.0
      %709 = vmatpush1.msra.mxu0 0.0
      %710 = vmatprep.subr.mxu0 0.0
      %711 = vmatpush1.msra.mxu0 0.0
      %712 = vmatprep.mubr.f32.mxu0 0.0
      %713 = vmatmul.mubr.f32.gmra.mrb[0].mxu0 %v568
      %v714 = vpop.f32.mrb[0].mxu0
      %v715 = vadd.f32 0.0, %v714
      %v716 = vpop.f32.mrb[0].mxu0
      %717 = vmatprep.mubr.f32.mxu0 0.0
      %718 = vmatmul.mubr.f32.gmra.mrb[0].mxu0 %v571
      %v719 = vpop.f32.mrb[0].mxu0
      %v720 = vadd.f32 0.0, %v719
      %v721 = vpop.f32.mrb[0].mxu0
      %722 = vdwg.mxu0
      %723 = vmatprep.subr.mxu0 0.0
      %724 = vmatpush1.msra.mxu0 %v504
      %725 = vmatprep.subr.mxu0 0.0
      %726 = vmatpush1.msra.mxu0 %v505
      %727 = vmatprep.subr.mxu0 0.0
      %728 = vmatpush1.msra.mxu0 0.0
      %729 = vmatprep.subr.mxu0 0.0
      %730 = vmatpush1.msra.mxu0 0.0
      %731 = vmatprep.subr.mxu0 0.0
      %732 = vmatpush1.msra.mxu0 0.0
      %733 = vmatprep.subr.mxu0 0.0
      %734 = vmatpush1.msra.mxu0 0.0
      %735 = vmatprep.subr.mxu0 0.0
      %736 = vmatpush1.msra.mxu0 0.0
      %737 = vmatprep.subr.mxu0 0.0
      %738 = vmatpush1.msra.mxu0 0.0
      %739 = vmatprep.subr.mxu0 0.0
      %740 = vmatpush1.msra.mxu0 0.0
      %741 = vmatprep.subr.mxu0 0.0
      %742 = vmatpush1.msra.mxu0 0.0
      %743 = vmatprep.subr.mxu0 0.0
      %744 = vmatpush1.msra.mxu0 0.0
      %745 = vmatprep.subr.mxu0 0.0
      %746 = vmatpush1.msra.mxu0 0.0
      %747 = vmatprep.subr.mxu0 0.0
      %748 = vmatpush1.msra.mxu0 0.0
      %749 = vmatprep.subr.mxu0 0.0
      %750 = vmatpush1.msra.mxu0 0.0
      %751 = vmatprep.subr.mxu0 0.0
      %752 = vmatpush1.msra.mxu0 0.0
      %753 = vmatprep.subr.mxu0 0.0
      %754 = vmatpush1.msra.mxu0 0.0
      %755 = vmatprep.subr.mxu0 0.0
      %756 = vmatpush1.msra.mxu0 0.0
      %757 = vmatprep.subr.mxu0 0.0
      %758 = vmatpush1.msra.mxu0 0.0
      %759 = vmatprep.subr.mxu0 0.0
      %760 = vmatpush1.msra.mxu0 0.0
      %761 = vmatprep.subr.mxu0 0.0
      %762 = vmatpush1.msra.mxu0 0.0
      %763 = vmatprep.subr.mxu0 0.0
      %764 = vmatpush1.msra.mxu0 0.0
      %765 = vmatprep.subr.mxu0 0.0
      %766 = vmatpush1.msra.mxu0 0.0
      %767 = vmatprep.subr.mxu0 0.0
      %768 = vmatpush1.msra.mxu0 0.0
      %769 = vmatprep.subr.mxu0 0.0
      %770 = vmatpush1.msra.mxu0 0.0
      %771 = vmatprep.subr.mxu0 0.0
      %772 = vmatpush1.msra.mxu0 0.0
      %773 = vmatprep.subr.mxu0 0.0
      %774 = vmatpush1.msra.mxu0 0.0
      %775 = vmatprep.subr.mxu0 0.0
      %776 = vmatpush1.msra.mxu0 0.0
      %777 = vmatprep.subr.mxu0 0.0
      %778 = vmatpush1.msra.mxu0 0.0
      %779 = vmatprep.subr.mxu0 0.0
      %780 = vmatpush1.msra.mxu0 0.0
      %781 = vmatprep.subr.mxu0 0.0
      %782 = vmatpush1.msra.mxu0 0.0
      %783 = vmatprep.subr.mxu0 0.0
      %784 = vmatpush1.msra.mxu0 0.0
      %785 = vmatprep.subr.mxu0 0.0
      %786 = vmatpush1.msra.mxu0 0.0
      %787 = vmatprep.mubr.f32.mxu0 0.0
      %788 = vmatmul.mubr.f32.gmra.mrb[0].mxu0 %v568
      %v789 = vpop.f32.mrb[0].mxu0
      %v790 = vadd.f32 0.0, %v789
      %v791 = vpop.f32.mrb[0].mxu0
      %792 = vmatprep.mubr.f32.mxu0 0.0
      %793 = vmatmul.mubr.f32.gmra.mrb[0].mxu0 %v571
      %v794 = vpop.f32.mrb[0].mxu0
      %v795 = vadd.f32 0.0, %v794
      %v796 = vpop.f32.mrb[0].mxu0
      %797 = vdwg.mxu0
      %798 = vmatprep.subr.mxu0 0.0
      %799 = vmatpush1.msra.mxu0 %v506
      %800 = vmatprep.subr.mxu0 0.0
      %801 = vmatpush1.msra.mxu0 %v507
      %802 = vmatprep.subr.mxu0 0.0
      %803 = vmatpush1.msra.mxu0 0.0
      %804 = vmatprep.subr.mxu0 0.0
      %805 = vmatpush1.msra.mxu0 0.0
      %806 = vmatprep.subr.mxu0 0.0
      %807 = vmatpush1.msra.mxu0 0.0
      %808 = vmatprep.subr.mxu0 0.0
      %809 = vmatpush1.msra.mxu0 0.0
      %810 = vmatprep.subr.mxu0 0.0
      %811 = vmatpush1.msra.mxu0 0.0
      %812 = vmatprep.subr.mxu0 0.0
      %813 = vmatpush1.msra.mxu0 0.0
      %814 = vmatprep.subr.mxu0 0.0
      %815 = vmatpush1.msra.mxu0 0.0
      %816 = vmatprep.subr.mxu0 0.0
      %817 = vmatpush1.msra.mxu0 0.0
      %818 = vmatprep.subr.mxu0 0.0
      %819 = vmatpush1.msra.mxu0 0.0
      %820 = vmatprep.subr.mxu0 0.0
      %821 = vmatpush1.msra.mxu0 0.0
      %822 = vmatprep.subr.mxu0 0.0
      %823 = vmatpush1.msra.mxu0 0.0
      %824 = vmatprep.subr.mxu0 0.0
      %825 = vmatpush1.msra.mxu0 0.0
      %826 = vmatprep.subr.mxu0 0.0
      %827 = vmatpush1.msra.mxu0 0.0
      %828 = vmatprep.subr.mxu0 0.0
      %829 = vmatpush1.msra.mxu0 0.0
      %830 = vmatprep.subr.mxu0 0.0
      %831 = vmatpush1.msra.mxu0 0.0
      %832 = vmatprep.subr.mxu0 0.0
      %833 = vmatpush1.msra.mxu0 0.0
      %834 = vmatprep.subr.mxu0 0.0
      %835 = vmatpush1.msra.mxu0 0.0
      %836 = vmatprep.subr.mxu0 0.0
      %837 = vmatpush1.msra.mxu0 0.0
      %838 = vmatprep.subr.mxu0 0.0
      %839 = vmatpush1.msra.mxu0 0.0
      %840 = vmatprep.subr.mxu0 0.0
      %841 = vmatpush1.msra.mxu0 0.0
      %842 = vmatprep.subr.mxu0 0.0
      %843 = vmatpush1.msra.mxu0 0.0
      %844 = vmatprep.subr.mxu0 0.0
      %845 = vmatpush1.msra.mxu0 0.0
      %846 = vmatprep.subr.mxu0 0.0
      %847 = vmatpush1.msra.mxu0 0.0
      %848 = vmatprep.subr.mxu0 0.0
      %849 = vmatpush1.msra.mxu0 0.0
      %850 = vmatprep.subr.mxu0 0.0
      %851 = vmatpush1.msra.mxu0 0.0
      %852 = vmatprep.subr.mxu0 0.0
      %853 = vmatpush1.msra.mxu0 0.0
      %854 = vmatprep.subr.mxu0 0.0
      %855 = vmatpush1.msra.mxu0 0.0
      %856 = vmatprep.subr.mxu0 0.0
      %857 = vmatpush1.msra.mxu0 0.0
      %858 = vmatprep.subr.mxu0 0.0
      %859 = vmatpush1.msra.mxu0 0.0
      %860 = vmatprep.subr.mxu0 0.0
      %861 = vmatpush1.msra.mxu0 0.0
      %862 = vmatprep.mubr.f32.mxu0 0.0
      %863 = vmatmul.mubr.f32.gmra.mrb[0].mxu0 %v568
      %v864 = vpop.f32.mrb[0].mxu0
      %v865 = vadd.f32 0.0, %v864
      %v866 = vpop.f32.mrb[0].mxu0
      %867 = vmatprep.mubr.f32.mxu0 0.0
      %868 = vmatmul.mubr.f32.gmra.mrb[0].mxu0 %v571
      %v869 = vpop.f32.mrb[0].mxu0
      %v870 = vadd.f32 0.0, %v869
      %v871 = vpop.f32.mrb[0].mxu0
      %872 = vdwg.mxu0
      %873 = vmatprep.subr.mxu0 0.0
      %874 = vmatpush1.msra.mxu0 %v508
      %875 = vmatprep.subr.mxu0 0.0
      %876 = vmatpush1.msra.mxu0 %v509
      %877 = vmatprep.subr.mxu0 0.0
      %878 = vmatpush1.msra.mxu0 0.0
      %879 = vmatprep.subr.mxu0 0.0
      %880 = vmatpush1.msra.mxu0 0.0
      %881 = vmatprep.subr.mxu0 0.0
      %882 = vmatpush1.msra.mxu0 0.0
      %883 = vmatprep.subr.mxu0 0.0
      %884 = vmatpush1.msra.mxu0 0.0
      %885 = vmatprep.subr.mxu0 0.0
      %886 = vmatpush1.msra.mxu0 0.0
      %887 = vmatprep.subr.mxu0 0.0
      %888 = vmatpush1.msra.mxu0 0.0
      %889 = vmatprep.subr.mxu0 0.0
      %890 = vmatpush1.msra.mxu0 0.0
      %891 = vmatprep.subr.mxu0 0.0
      %892 = vmatpush1.msra.mxu0 0.0
      %893 = vmatprep.subr.mxu0 0.0
      %894 = vmatpush1.msra.mxu0 0.0
      %895 = vmatprep.subr.mxu0 0.0
      %896 = vmatpush1.msra.mxu0 0.0
      %897 = vmatprep.subr.mxu0 0.0
      %898 = vmatpush1.msra.mxu0 0.0
      %899 = vmatprep.subr.mxu0 0.0
      %900 = vmatpush1.msra.mxu0 0.0
      %901 = vmatprep.subr.mxu0 0.0
      %902 = vmatpush1.msra.mxu0 0.0
      %903 = vmatprep.subr.mxu0 0.0
      %904 = vmatpush1.msra.mxu0 0.0
      %905 = vmatprep.subr.mxu0 0.0
      %906 = vmatpush1.msra.mxu0 0.0
      %907 = vmatprep.subr.mxu0 0.0
      %908 = vmatpush1.msra.mxu0 0.0
      %909 = vmatprep.subr.mxu0 0.0
      %910 = vmatpush1.msra.mxu0 0.0
      %911 = vmatprep.subr.mxu0 0.0
      %912 = vmatpush1.msra.mxu0 0.0
      %913 = vmatprep.subr.mxu0 0.0
      %914 = vmatpush1.msra.mxu0 0.0
      %915 = vmatprep.subr.mxu0 0.0
      %916 = vmatpush1.msra.mxu0 0.0
      %917 = vmatprep.subr.mxu0 0.0
      %918 = vmatpush1.msra.mxu0 0.0
      %919 = vmatprep.subr.mxu0 0.0
      %920 = vmatpush1.msra.mxu0 0.0
      %921 = vmatprep.subr.mxu0 0.0
      %922 = vmatpush1.msra.mxu0 0.0
      %923 = vmatprep.subr.mxu0 0.0
      %924 = vmatpush1.msra.mxu0 0.0
      %925 = vmatprep.subr.mxu0 0.0
      %926 = vmatpush1.msra.mxu0 0.0
      %927 = vmatprep.subr.mxu0 0.0
      %928 = vmatpush1.msra.mxu0 0.0
      %929 = vmatprep.subr.mxu0 0.0
      %930 = vmatpush1.msra.mxu0 0.0
      %931 = vmatprep.subr.mxu0 0.0
      %932 = vmatpush1.msra.mxu0 0.0
      %933 = vmatprep.subr.mxu0 0.0
      %934 = vmatpush1.msra.mxu0 0.0
      %935 = vmatprep.subr.mxu0 0.0
      %936 = vmatpush1.msra.mxu0 0.0
      %937 = vmatprep.mubr.f32.mxu0 0.0
      %938 = vmatmul.mubr.f32.gmra.mrb[0].mxu0 %v568
      %v939 = vpop.f32.mrb[0].mxu0
      %v940 = vadd.f32 0.0, %v939
      %v941 = vpop.f32.mrb[0].mxu0
      %942 = vmatprep.mubr.f32.mxu0 0.0
      %943 = vmatmul.mubr.f32.gmra.mrb[0].mxu0 %v571
      %v944 = vpop.f32.mrb[0].mxu0
      %v945 = vadd.f32 0.0, %v944
      %v946 = vpop.f32.mrb[0].mxu0
      %947 = vdwg.mxu0
      %948 = vmatprep.subr.mxu0 0.0
      %949 = vmatpush1.msra.mxu0 %v510
      %950 = vmatprep.subr.mxu0 0.0
      %951 = vmatpush1.msra.mxu0 %v511
      %952 = vmatprep.subr.mxu0 0.0
      %953 = vmatpush1.msra.mxu0 0.0
      %954 = vmatprep.subr.mxu0 0.0
      %955 = vmatpush1.msra.mxu0 0.0
      %956 = vmatprep.subr.mxu0 0.0
      %957 = vmatpush1.msra.mxu0 0.0
      %958 = vmatprep.subr.mxu0 0.0
      %959 = vmatpush1.msra.mxu0 0.0
      %960 = vmatprep.subr.mxu0 0.0
      %961 = vmatpush1.msra.mxu0 0.0
      %962 = vmatprep.subr.mxu0 0.0
      %963 = vmatpush1.msra.mxu0 0.0
      %964 = vmatprep.subr.mxu0 0.0
      %965 = vmatpush1.msra.mxu0 0.0
      %966 = vmatprep.subr.mxu0 0.0
      %967 = vmatpush1.msra.mxu0 0.0
      %968 = vmatprep.subr.mxu0 0.0
      %969 = vmatpush1.msra.mxu0 0.0
      %970 = vmatprep.subr.mxu0 0.0
      %971 = vmatpush1.msra.mxu0 0.0
      %972 = vmatprep.subr.mxu0 0.0
      %973 = vmatpush1.msra.mxu0 0.0
      %974 = vmatprep.subr.mxu0 0.0
      %975 = vmatpush1.msra.mxu0 0.0
      %976 = vmatprep.subr.mxu0 0.0
      %977 = vmatpush1.msra.mxu0 0.0
      %978 = vmatprep.subr.mxu0 0.0
      %979 = vmatpush1.msra.mxu0 0.0
      %980 = vmatprep.subr.mxu0 0.0
      %981 = vmatpush1.msra.mxu0 0.0
      %982 = vmatprep.subr.mxu0 0.0
      %983 = vmatpush1.msra.mxu0 0.0
      %984 = vmatprep.subr.mxu0 0.0
      %985 = vmatpush1.msra.mxu0 0.0
      %986 = vmatprep.subr.mxu0 0.0
      %987 = vmatpush1.msra.mxu0 0.0
      %988 = vmatprep.subr.mxu0 0.0
      %989 = vmatpush1.msra.mxu0 0.0
      %990 = vmatprep.subr.mxu0 0.0
      %991 = vmatpush1.msra.mxu0 0.0
      %992 = vmatprep.subr.mxu0 0.0
      %993 = vmatpush1.msra.mxu0 0.0
      %994 = vmatprep.subr.mxu0 0.0
      %995 = vmatpush1.msra.mxu0 0.0
      %996 = vmatprep.subr.mxu0 0.0
      %997 = vmatpush1.msra.mxu0 0.0
      %998 = vmatprep.subr.mxu0 0.0
      %999 = vmatpush1.msra.mxu0 0.0
      %1000 = vmatprep.subr.mxu0 0.0
      %1001 = vmatpush1.msra.mxu0 0.0
      %1002 = vmatprep.subr.mxu0 0.0
      %1003 = vmatpush1.msra.mxu0 0.0
      %1004 = vmatprep.subr.mxu0 0.0
      %1005 = vmatpush1.msra.mxu0 0.0
      %1006 = vmatprep.subr.mxu0 0.0
      %1007 = vmatpush1.msra.mxu0 0.0
      %1008 = vmatprep.subr.mxu0 0.0
      %1009 = vmatpush1.msra.mxu0 0.0
      %1010 = vmatprep.subr.mxu0 0.0
      %1011 = vmatpush1.msra.mxu0 0.0
      %1012 = vmatprep.mubr.f32.mxu0 0.0
      %1013 = vmatmul.mubr.f32.gmra.mrb[0].mxu0 %v568
      %v1014 = vpop.f32.mrb[0].mxu0
      %v1015 = vadd.f32 0.0, %v1014
      %v1016 = vpop.f32.mrb[0].mxu0
      %1017 = vmatprep.mubr.f32.mxu0 0.0
      %1018 = vmatmul.mubr.f32.gmra.mrb[0].mxu0 %v571
      %v1019 = vpop.f32.mrb[0].mxu0
      %v1020 = vadd.f32 0.0, %v1019
      %v1021 = vpop.f32.mrb[0].mxu0
      %1022 = vdwg.mxu0
      %v1024 = vsel %vm566, %v550, 0
      %v1027 = vsel %vm566, %v551, 0
      %1029 = vmatprep.subr.mxu0 0.0
      %1030 = vmatpush1.msra.mxu0 %v536
      %1031 = vmatprep.subr.mxu0 0.0
      %1032 = vmatpush1.msra.mxu0 %v537
      %1033 = vmatprep.subr.mxu0 0.0
      %1034 = vmatpush1.msra.mxu0 0.0
      %1035 = vmatprep.subr.mxu0 0.0
      %1036 = vmatpush1.msra.mxu0 0.0
      %1037 = vmatprep.subr.mxu0 0.0
      %1038 = vmatpush1.msra.mxu0 0.0
      %1039 = vmatprep.subr.mxu0 0.0
      %1040 = vmatpush1.msra.mxu0 0.0
      %1041 = vmatprep.subr.mxu0 0.0
      %1042 = vmatpush1.msra.mxu0 0.0
      %1043 = vmatprep.subr.mxu0 0.0
      %1044 = vmatpush1.msra.mxu0 0.0
      %1045 = vmatprep.subr.mxu0 0.0
      %1046 = vmatpush1.msra.mxu0 0.0
      %1047 = vmatprep.subr.mxu0 0.0
      %1048 = vmatpush1.msra.mxu0 0.0
      %1049 = vmatprep.subr.mxu0 0.0
      %1050 = vmatpush1.msra.mxu0 0.0
      %1051 = vmatprep.subr.mxu0 0.0
      %1052 = vmatpush1.msra.mxu0 0.0
      %1053 = vmatprep.subr.mxu0 0.0
      %1054 = vmatpush1.msra.mxu0 0.0
      %1055 = vmatprep.subr.mxu0 0.0
      %1056 = vmatpush1.msra.mxu0 0.0
      %1057 = vmatprep.subr.mxu0 0.0
      %1058 = vmatpush1.msra.mxu0 0.0
      %1059 = vmatprep.subr.mxu0 0.0
      %1060 = vmatpush1.msra.mxu0 0.0
      %1061 = vmatprep.subr.mxu0 0.0
      %1062 = vmatpush1.msra.mxu0 0.0
      %1063 = vmatprep.subr.mxu0 0.0
      %1064 = vmatpush1.msra.mxu0 0.0
      %1065 = vmatprep.subr.mxu0 0.0
      %1066 = vmatpush1.msra.mxu0 0.0
      %1067 = vmatprep.subr.mxu0 0.0
      %1068 = vmatpush1.msra.mxu0 0.0
      %1069 = vmatprep.subr.mxu0 0.0
      %1070 = vmatpush1.msra.mxu0 0.0
      %1071 = vmatprep.subr.mxu0 0.0
      %1072 = vmatpush1.msra.mxu0 0.0
      %1073 = vmatprep.subr.mxu0 0.0
      %1074 = vmatpush1.msra.mxu0 0.0
      %1075 = vmatprep.subr.mxu0 0.0
      %1076 = vmatpush1.msra.mxu0 0.0
      %1077 = vmatprep.subr.mxu0 0.0
      %1078 = vmatpush1.msra.mxu0 0.0
      %1079 = vmatprep.subr.mxu0 0.0
      %1080 = vmatpush1.msra.mxu0 0.0
      %1081 = vmatprep.subr.mxu0 0.0
      %1082 = vmatpush1.msra.mxu0 0.0
      %1083 = vmatprep.subr.mxu0 0.0
      %1084 = vmatpush1.msra.mxu0 0.0
      %1085 = vmatprep.subr.mxu0 0.0
      %1086 = vmatpush1.msra.mxu0 0.0
      %1087 = vmatprep.subr.mxu0 0.0
      %1088 = vmatpush1.msra.mxu0 0.0
      %1089 = vmatprep.subr.mxu0 0.0
      %1090 = vmatpush1.msra.mxu0 0.0
      %1091 = vmatprep.subr.mxu0 0.0
      %1092 = vmatpush1.msra.mxu0 0.0
      %1093 = vmatprep.mubr.f32.mxu0 0.0
      %1094 = vmatmul.mubr.f32.gmra.mrb[0].mxu0 %v1024
      %v1095 = vpop.f32.mrb[0].mxu0
      %v1096 = vadd.f32 0.0, %v1095
      %v1097 = vpop.f32.mrb[0].mxu0
      %1098 = vmatprep.mubr.f32.mxu0 0.0
      %1099 = vmatmul.mubr.f32.gmra.mrb[0].mxu0 %v1027
      %v1100 = vpop.f32.mrb[0].mxu0
      %v1101 = vadd.f32 0.0, %v1100
      %v1102 = vpop.f32.mrb[0].mxu0
      %1103 = vdwg.mxu0
      %1104 = vmatprep.subr.mxu0 0.0
      %1105 = vmatpush1.msra.mxu0 %v538
      %1106 = vmatprep.subr.mxu0 0.0
      %1107 = vmatpush1.msra.mxu0 %v539
      %1108 = vmatprep.subr.mxu0 0.0
      %1109 = vmatpush1.msra.mxu0 0.0
      %1110 = vmatprep.subr.mxu0 0.0
      %1111 = vmatpush1.msra.mxu0 0.0
      %1112 = vmatprep.subr.mxu0 0.0
      %1113 = vmatpush1.msra.mxu0 0.0
      %1114 = vmatprep.subr.mxu0 0.0
      %1115 = vmatpush1.msra.mxu0 0.0
      %1116 = vmatprep.subr.mxu0 0.0
      %1117 = vmatpush1.msra.mxu0 0.0
      %1118 = vmatprep.subr.mxu0 0.0
      %1119 = vmatpush1.msra.mxu0 0.0
      %1120 = vmatprep.subr.mxu0 0.0
      %1121 = vmatpush1.msra.mxu0 0.0
      %1122 = vmatprep.subr.mxu0 0.0
      %1123 = vmatpush1.msra.mxu0 0.0
      %1124 = vmatprep.subr.mxu0 0.0
      %1125 = vmatpush1.msra.mxu0 0.0
      %1126 = vmatprep.subr.mxu0 0.0
      %1127 = vmatpush1.msra.mxu0 0.0
      %1128 = vmatprep.subr.mxu0 0.0
      %1129 = vmatpush1.msra.mxu0 0.0
      %1130 = vmatprep.subr.mxu0 0.0
      %1131 = vmatpush1.msra.mxu0 0.0
      %1132 = vmatprep.subr.mxu0 0.0
      %1133 = vmatpush1.msra.mxu0 0.0
      %1134 = vmatprep.subr.mxu0 0.0
      %1135 = vmatpush1.msra.mxu0 0.0
      %1136 = vmatprep.subr.mxu0 0.0
      %1137 = vmatpush1.msra.mxu0 0.0
      %1138 = vmatprep.subr.mxu0 0.0
      %1139 = vmatpush1.msra.mxu0 0.0
      %1140 = vmatprep.subr.mxu0 0.0
      %1141 = vmatpush1.msra.mxu0 0.0
      %1142 = vmatprep.subr.mxu0 0.0
      %1143 = vmatpush1.msra.mxu0 0.0
      %1144 = vmatprep.subr.mxu0 0.0
      %1145 = vmatpush1.msra.mxu0 0.0
      %1146 = vmatprep.subr.mxu0 0.0
      %1147 = vmatpush1.msra.mxu0 0.0
      %1148 = vmatprep.subr.mxu0 0.0
      %1149 = vmatpush1.msra.mxu0 0.0
      %1150 = vmatprep.subr.mxu0 0.0
      %1151 = vmatpush1.msra.mxu0 0.0
      %1152 = vmatprep.subr.mxu0 0.0
      %1153 = vmatpush1.msra.mxu0 0.0
      %1154 = vmatprep.subr.mxu0 0.0
      %1155 = vmatpush1.msra.mxu0 0.0
      %1156 = vmatprep.subr.mxu0 0.0
      %1157 = vmatpush1.msra.mxu0 0.0
      %1158 = vmatprep.subr.mxu0 0.0
      %1159 = vmatpush1.msra.mxu0 0.0
      %1160 = vmatprep.subr.mxu0 0.0
      %1161 = vmatpush1.msra.mxu0 0.0
      %1162 = vmatprep.subr.mxu0 0.0
      %1163 = vmatpush1.msra.mxu0 0.0
      %1164 = vmatprep.subr.mxu0 0.0
      %1165 = vmatpush1.msra.mxu0 0.0
      %1166 = vmatprep.subr.mxu0 0.0
      %1167 = vmatpush1.msra.mxu0 0.0
      %1168 = vmatprep.mubr.f32.mxu0 0.0
      %1169 = vmatmul.mubr.f32.gmra.mrb[0].mxu0 %v1024
      %v1170 = vpop.f32.mrb[0].mxu0
      %v1171 = vadd.f32 0.0, %v1170
      %v1172 = vpop.f32.mrb[0].mxu0
      %1173 = vmatprep.mubr.f32.mxu0 0.0
      %1174 = vmatmul.mubr.f32.gmra.mrb[0].mxu0 %v1027
      %v1175 = vpop.f32.mrb[0].mxu0
      %v1176 = vadd.f32 0.0, %v1175
      %v1177 = vpop.f32.mrb[0].mxu0
      %1178 = vdwg.mxu0
      %1179 = vmatprep.subr.mxu0 0.0
      %1180 = vmatpush1.msra.mxu0 %v540
      %1181 = vmatprep.subr.mxu0 0.0
      %1182 = vmatpush1.msra.mxu0 %v541
      %1183 = vmatprep.subr.mxu0 0.0
      %1184 = vmatpush1.msra.mxu0 0.0
      %1185 = vmatprep.subr.mxu0 0.0
      %1186 = vmatpush1.msra.mxu0 0.0
      %1187 = vmatprep.subr.mxu0 0.0
      %1188 = vmatpush1.msra.mxu0 0.0
      %1189 = vmatprep.subr.mxu0 0.0
      %1190 = vmatpush1.msra.mxu0 0.0
      %1191 = vmatprep.subr.mxu0 0.0
      %1192 = vmatpush1.msra.mxu0 0.0
      %1193 = vmatprep.subr.mxu0 0.0
      %1194 = vmatpush1.msra.mxu0 0.0
      %1195 = vmatprep.subr.mxu0 0.0
      %1196 = vmatpush1.msra.mxu0 0.0
      %1197 = vmatprep.subr.mxu0 0.0
      %1198 = vmatpush1.msra.mxu0 0.0
      %1199 = vmatprep.subr.mxu0 0.0
      %1200 = vmatpush1.msra.mxu0 0.0
      %1201 = vmatprep.subr.mxu0 0.0
      %1202 = vmatpush1.msra.mxu0 0.0
      %1203 = vmatprep.subr.mxu0 0.0
      %1204 = vmatpush1.msra.mxu0 0.0
      %1205 = vmatprep.subr.mxu0 0.0
      %1206 = vmatpush1.msra.mxu0 0.0
      %1207 = vmatprep.subr.mxu0 0.0
      %1208 = vmatpush1.msra.mxu0 0.0
      %1209 = vmatprep.subr.mxu0 0.0
      %1210 = vmatpush1.msra.mxu0 0.0
      %1211 = vmatprep.subr.mxu0 0.0
      %1212 = vmatpush1.msra.mxu0 0.0
      %1213 = vmatprep.subr.mxu0 0.0
      %1214 = vmatpush1.msra.mxu0 0.0
      %1215 = vmatprep.subr.mxu0 0.0
      %1216 = vmatpush1.msra.mxu0 0.0
      %1217 = vmatprep.subr.mxu0 0.0
      %1218 = vmatpush1.msra.mxu0 0.0
      %1219 = vmatprep.subr.mxu0 0.0
      %1220 = vmatpush1.msra.mxu0 0.0
      %1221 = vmatprep.subr.mxu0 0.0
      %1222 = vmatpush1.msra.mxu0 0.0
      %1223 = vmatprep.subr.mxu0 0.0
      %1224 = vmatpush1.msra.mxu0 0.0
      %1225 = vmatprep.subr.mxu0 0.0
      %1226 = vmatpush1.msra.mxu0 0.0
      %1227 = vmatprep.subr.mxu0 0.0
      %1228 = vmatpush1.msra.mxu0 0.0
      %1229 = vmatprep.subr.mxu0 0.0
      %1230 = vmatpush1.msra.mxu0 0.0
      %1231 = vmatprep.subr.mxu0 0.0
      %1232 = vmatpush1.msra.mxu0 0.0
      %1233 = vmatprep.subr.mxu0 0.0
      %1234 = vmatpush1.msra.mxu0 0.0
      %1235 = vmatprep.subr.mxu0 0.0
      %1236 = vmatpush1.msra.mxu0 0.0
      %1237 = vmatprep.subr.mxu0 0.0
      %1238 = vmatpush1.msra.mxu0 0.0
      %1239 = vmatprep.subr.mxu0 0.0
      %1240 = vmatpush1.msra.mxu0 0.0
      %1241 = vmatprep.subr.mxu0 0.0
      %1242 = vmatpush1.msra.mxu0 0.0
      %1243 = vmatprep.mubr.f32.mxu0 0.0
      %1244 = vmatmul.mubr.f32.gmra.mrb[0].mxu0 %v1024
      %v1245 = vpop.f32.mrb[0].mxu0
      %v1246 = vadd.f32 0.0, %v1245
      %v1247 = vpop.f32.mrb[0].mxu0
      %1248 = vmatprep.mubr.f32.mxu0 0.0
      %1249 = vmatmul.mubr.f32.gmra.mrb[0].mxu0 %v1027
      %v1250 = vpop.f32.mrb[0].mxu0
      %v1251 = vadd.f32 0.0, %v1250
      %v1252 = vpop.f32.mrb[0].mxu0
      %1253 = vdwg.mxu0
      %1254 = vmatprep.subr.mxu0 0.0
      %1255 = vmatpush1.msra.mxu0 %v542
      %1256 = vmatprep.subr.mxu0 0.0
      %1257 = vmatpush1.msra.mxu0 %v543
      %1258 = vmatprep.subr.mxu0 0.0
      %1259 = vmatpush1.msra.mxu0 0.0
      %1260 = vmatprep.subr.mxu0 0.0
      %1261 = vmatpush1.msra.mxu0 0.0
      %1262 = vmatprep.subr.mxu0 0.0
      %1263 = vmatpush1.msra.mxu0 0.0
      %1264 = vmatprep.subr.mxu0 0.0
      %1265 = vmatpush1.msra.mxu0 0.0
      %1266 = vmatprep.subr.mxu0 0.0
      %1267 = vmatpush1.msra.mxu0 0.0
      %1268 = vmatprep.subr.mxu0 0.0
      %1269 = vmatpush1.msra.mxu0 0.0
      %1270 = vmatprep.subr.mxu0 0.0
      %1271 = vmatpush1.msra.mxu0 0.0
      %1272 = vmatprep.subr.mxu0 0.0
      %1273 = vmatpush1.msra.mxu0 0.0
      %1274 = vmatprep.subr.mxu0 0.0
      %1275 = vmatpush1.msra.mxu0 0.0
      %1276 = vmatprep.subr.mxu0 0.0
      %1277 = vmatpush1.msra.mxu0 0.0
      %1278 = vmatprep.subr.mxu0 0.0
      %1279 = vmatpush1.msra.mxu0 0.0
      %1280 = vmatprep.subr.mxu0 0.0
      %1281 = vmatpush1.msra.mxu0 0.0
      %1282 = vmatprep.subr.mxu0 0.0
      %1283 = vmatpush1.msra.mxu0 0.0
      %1284 = vmatprep.subr.mxu0 0.0
      %1285 = vmatpush1.msra.mxu0 0.0
      %1286 = vmatprep.subr.mxu0 0.0
      %1287 = vmatpush1.msra.mxu0 0.0
      %1288 = vmatprep.subr.mxu0 0.0
      %1289 = vmatpush1.msra.mxu0 0.0
      %1290 = vmatprep.subr.mxu0 0.0
      %1291 = vmatpush1.msra.mxu0 0.0
      %1292 = vmatprep.subr.mxu0 0.0
      %1293 = vmatpush1.msra.mxu0 0.0
      %1294 = vmatprep.subr.mxu0 0.0
      %1295 = vmatpush1.msra.mxu0 0.0
      %1296 = vmatprep.subr.mxu0 0.0
      %1297 = vmatpush1.msra.mxu0 0.0
      %1298 = vmatprep.subr.mxu0 0.0
      %1299 = vmatpush1.msra.mxu0 0.0
      %1300 = vmatprep.subr.mxu0 0.0
      %1301 = vmatpush1.msra.mxu0 0.0
      %1302 = vmatprep.subr.mxu0 0.0
      %1303 = vmatpush1.msra.mxu0 0.0
      %1304 = vmatprep.subr.mxu0 0.0
      %1305 = vmatpush1.msra.mxu0 0.0
      %1306 = vmatprep.subr.mxu0 0.0
      %1307 = vmatpush1.msra.mxu0 0.0
      %1308 = vmatprep.subr.mxu0 0.0
      %1309 = vmatpush1.msra.mxu0 0.0
      %1310 = vmatprep.subr.mxu0 0.0
      %1311 = vmatpush1.msra.mxu0 0.0
      %1312 = vmatprep.subr.mxu0 0.0
      %1313 = vmatpush1.msra.mxu0 0.0
      %1314 = vmatprep.subr.mxu0 0.0
      %1315 = vmatpush1.msra.mxu0 0.0
      %1316 = vmatprep.subr.mxu0 0.0
      %1317 = vmatpush1.msra.mxu0 0.0
      %1318 = vmatprep.mubr.f32.mxu0 0.0
      %1319 = vmatmul.mubr.f32.gmra.mrb[0].mxu0 %v1024
      %v1320 = vpop.f32.mrb[0].mxu0
      %v1321 = vadd.f32 0.0, %v1320
      %v1322 = vpop.f32.mrb[0].mxu0
      %1323 = vmatprep.mubr.f32.mxu0 0.0
      %1324 = vmatmul.mubr.f32.gmra.mrb[0].mxu0 %v1027
      %v1325 = vpop.f32.mrb[0].mxu0
      %v1326 = vadd.f32 0.0, %v1325
      %v1327 = vpop.f32.mrb[0].mxu0
      %1328 = vdwg.mxu0
      %1329 = vmatprep.subr.mxu0 0.0
      %1330 = vmatpush1.msra.mxu0 %v544
      %1331 = vmatprep.subr.mxu0 0.0
      %1332 = vmatpush1.msra.mxu0 %v545
      %1333 = vmatprep.subr.mxu0 0.0
      %1334 = vmatpush1.msra.mxu0 0.0
      %1335 = vmatprep.subr.mxu0 0.0
      %1336 = vmatpush1.msra.mxu0 0.0
      %1337 = vmatprep.subr.mxu0 0.0
      %1338 = vmatpush1.msra.mxu0 0.0
      %1339 = vmatprep.subr.mxu0 0.0
      %1340 = vmatpush1.msra.mxu0 0.0
      %1341 = vmatprep.subr.mxu0 0.0
      %1342 = vmatpush1.msra.mxu0 0.0
      %1343 = vmatprep.subr.mxu0 0.0
      %1344 = vmatpush1.msra.mxu0 0.0
      %1345 = vmatprep.subr.mxu0 0.0
      %1346 = vmatpush1.msra.mxu0 0.0
      %1347 = vmatprep.subr.mxu0 0.0
      %1348 = vmatpush1.msra.mxu0 0.0
      %1349 = vmatprep.subr.mxu0 0.0
      %1350 = vmatpush1.msra.mxu0 0.0
      %1351 = vmatprep.subr.mxu0 0.0
      %1352 = vmatpush1.msra.mxu0 0.0
      %1353 = vmatprep.subr.mxu0 0.0
      %1354 = vmatpush1.msra.mxu0 0.0
      %1355 = vmatprep.subr.mxu0 0.0
      %1356 = vmatpush1.msra.mxu0 0.0
      %1357 = vmatprep.subr.mxu0 0.0
      %1358 = vmatpush1.msra.mxu0 0.0
      %1359 = vmatprep.subr.mxu0 0.0
      %1360 = vmatpush1.msra.mxu0 0.0
      %1361 = vmatprep.subr.mxu0 0.0
      %1362 = vmatpush1.msra.mxu0 0.0
      %1363 = vmatprep.subr.mxu0 0.0
      %1364 = vmatpush1.msra.mxu0 0.0
      %1365 = vmatprep.subr.mxu0 0.0
      %1366 = vmatpush1.msra.mxu0 0.0
      %1367 = vmatprep.subr.mxu0 0.0
      %1368 = vmatpush1.msra.mxu0 0.0
      %1369 = vmatprep.subr.mxu0 0.0
      %1370 = vmatpush1.msra.mxu0 0.0
      %1371 = vmatprep.subr.mxu0 0.0
      %1372 = vmatpush1.msra.mxu0 0.0
      %1373 = vmatprep.subr.mxu0 0.0
      %1374 = vmatpush1.msra.mxu0 0.0
      %1375 = vmatprep.subr.mxu0 0.0
      %1376 = vmatpush1.msra.mxu0 0.0
      %1377 = vmatprep.subr.mxu0 0.0
      %1378 = vmatpush1.msra.mxu0 0.0
      %1379 = vmatprep.subr.mxu0 0.0
      %1380 = vmatpush1.msra.mxu0 0.0
      %1381 = vmatprep.subr.mxu0 0.0
      %1382 = vmatpush1.msra.mxu0 0.0
      %1383 = vmatprep.subr.mxu0 0.0
      %1384 = vmatpush1.msra.mxu0 0.0
      %1385 = vmatprep.subr.mxu0 0.0
      %1386 = vmatpush1.msra.mxu0 0.0
      %1387 = vmatprep.subr.mxu0 0.0
      %1388 = vmatpush1.msra.mxu0 0.0
      %1389 = vmatprep.subr.mxu0 0.0
      %1390 = vmatpush1.msra.mxu0 0.0
      %1391 = vmatprep.subr.mxu0 0.0
      %1392 = vmatpush1.msra.mxu0 0.0
      %1393 = vmatprep.mubr.f32.mxu0 0.0
      %1394 = vmatmul.mubr.f32.gmra.mrb[0].mxu0 %v1024
      %v1395 = vpop.f32.mrb[0].mxu0
      %v1396 = vadd.f32 0.0, %v1395
      %v1397 = vpop.f32.mrb[0].mxu0
      %1398 = vmatprep.mubr.f32.mxu0 0.0
      %1399 = vmatmul.mubr.f32.gmra.mrb[0].mxu0 %v1027
      %v1400 = vpop.f32.mrb[0].mxu0
      %v1401 = vadd.f32 0.0, %v1400
      %v1402 = vpop.f32.mrb[0].mxu0
      %1403 = vdwg.mxu0
      %1404 = vmatprep.subr.mxu0 0.0
      %1405 = vmatpush1.msra.mxu0 %v546
      %1406 = vmatprep.subr.mxu0 0.0
      %1407 = vmatpush1.msra.mxu0 %v547
      %1408 = vmatprep.subr.mxu0 0.0
      %1409 = vmatpush1.msra.mxu0 0.0
      %1410 = vmatprep.subr.mxu0 0.0
      %1411 = vmatpush1.msra.mxu0 0.0
      %1412 = vmatprep.subr.mxu0 0.0
      %1413 = vmatpush1.msra.mxu0 0.0
      %1414 = vmatprep.subr.mxu0 0.0
      %1415 = vmatpush1.msra.mxu0 0.0
      %1416 = vmatprep.subr.mxu0 0.0
      %1417 = vmatpush1.msra.mxu0 0.0
      %1418 = vmatprep.subr.mxu0 0.0
      %1419 = vmatpush1.msra.mxu0 0.0
      %1420 = vmatprep.subr.mxu0 0.0
      %1421 = vmatpush1.msra.mxu0 0.0
      %1422 = vmatprep.subr.mxu0 0.0
      %1423 = vmatpush1.msra.mxu0 0.0
      %1424 = vmatprep.subr.mxu0 0.0
      %1425 = vmatpush1.msra.mxu0 0.0
      %1426 = vmatprep.subr.mxu0 0.0
      %1427 = vmatpush1.msra.mxu0 0.0
      %1428 = vmatprep.subr.mxu0 0.0
      %1429 = vmatpush1.msra.mxu0 0.0
      %1430 = vmatprep.subr.mxu0 0.0
      %1431 = vmatpush1.msra.mxu0 0.0
      %1432 = vmatprep.subr.mxu0 0.0
      %1433 = vmatpush1.msra.mxu0 0.0
      %1434 = vmatprep.subr.mxu0 0.0
      %1435 = vmatpush1.msra.mxu0 0.0
      %1436 = vmatprep.subr.mxu0 0.0
      %1437 = vmatpush1.msra.mxu0 0.0
      %1438 = vmatprep.subr.mxu0 0.0
      %1439 = vmatpush1.msra.mxu0 0.0
      %1440 = vmatprep.subr.mxu0 0.0
      %1441 = vmatpush1.msra.mxu0 0.0
      %1442 = vmatprep.subr.mxu0 0.0
      %1443 = vmatpush1.msra.mxu0 0.0
      %1444 = vmatprep.subr.mxu0 0.0
      %1445 = vmatpush1.msra.mxu0 0.0
      %1446 = vmatprep.subr.mxu0 0.0
      %1447 = vmatpush1.msra.mxu0 0.0
      %1448 = vmatprep.subr.mxu0 0.0
      %1449 = vmatpush1.msra.mxu0 0.0
      %1450 = vmatprep.subr.mxu0 0.0
      %1451 = vmatpush1.msra.mxu0 0.0
      %1452 = vmatprep.subr.mxu0 0.0
      %1453 = vmatpush1.msra.mxu0 0.0
      %1454 = vmatprep.subr.mxu0 0.0
      %1455 = vmatpush1.msra.mxu0 0.0
      %1456 = vmatprep.subr.mxu0 0.0
      %1457 = vmatpush1.msra.mxu0 0.0
      %1458 = vmatprep.subr.mxu0 0.0
      %1459 = vmatpush1.msra.mxu0 0.0
      %1460 = vmatprep.subr.mxu0 0.0
      %1461 = vmatpush1.msra.mxu0 0.0
      %1462 = vmatprep.subr.mxu0 0.0
      %1463 = vmatpush1.msra.mxu0 0.0
      %1464 = vmatprep.subr.mxu0 0.0
      %1465 = vmatpush1.msra.mxu0 0.0
      %1466 = vmatprep.subr.mxu0 0.0
      %1467 = vmatpush1.msra.mxu0 0.0
      %1468 = vmatprep.mubr.f32.mxu0 0.0
      %1469 = vmatmul.mubr.f32.gmra.mrb[0].mxu0 %v1024
      %v1470 = vpop.f32.mrb[0].mxu0
      %v1471 = vadd.f32 0.0, %v1470
      %v1472 = vpop.f32.mrb[0].mxu0
      %1473 = vmatprep.mubr.f32.mxu0 0.0
      %1474 = vmatmul.mubr.f32.gmra.mrb[0].mxu0 %v1027
      %v1475 = vpop.f32.mrb[0].mxu0
      %v1476 = vadd.f32 0.0, %v1475
      %v1477 = vpop.f32.mrb[0].mxu0
      %1478 = vdwg.mxu0
      %v1480 = vsel %vm566, %v552, 0
      %v1483 = vsel %vm566, %v553, 0
      %1485 = vmatprep.subr.mxu0 0.0
      %1486 = vmatpush1.msra.mxu0 %v554
      %1487 = vmatprep.subr.mxu0 0.0
      %1488 = vmatpush1.msra.mxu0 %v555
      %1489 = vmatprep.subr.mxu0 0.0
      %1490 = vmatpush1.msra.mxu0 0.0
      %1491 = vmatprep.subr.mxu0 0.0
      %1492 = vmatpush1.msra.mxu0 0.0
      %1493 = vmatprep.subr.mxu0 0.0
      %1494 = vmatpush1.msra.mxu0 0.0
      %1495 = vmatprep.subr.mxu0 0.0
      %1496 = vmatpush1.msra.mxu0 0.0
      %1497 = vmatprep.subr.mxu0 0.0
      %1498 = vmatpush1.msra.mxu0 0.0
      %1499 = vmatprep.subr.mxu0 0.0
      %1500 = vmatpush1.msra.mxu0 0.0
      %1501 = vmatprep.subr.mxu0 0.0
      %1502 = vmatpush1.msra.mxu0 0.0
      %1503 = vmatprep.subr.mxu0 0.0
      %1504 = vmatpush1.msra.mxu0 0.0
      %1505 = vmatprep.subr.mxu0 0.0
      %1506 = vmatpush1.msra.mxu0 0.0
      %1507 = vmatprep.subr.mxu0 0.0
      %1508 = vmatpush1.msra.mxu0 0.0
      %1509 = vmatprep.subr.mxu0 0.0
      %1510 = vmatpush1.msra.mxu0 0.0
      %1511 = vmatprep.subr.mxu0 0.0
      %1512 = vmatpush1.msra.mxu0 0.0
      %1513 = vmatprep.subr.mxu0 0.0
      %1514 = vmatpush1.msra.mxu0 0.0
      %1515 = vmatprep.subr.mxu0 0.0
      %1516 = vmatpush1.msra.mxu0 0.0
      %1517 = vmatprep.subr.mxu0 0.0
      %1518 = vmatpush1.msra.mxu0 0.0
      %1519 = vmatprep.subr.mxu0 0.0
      %1520 = vmatpush1.msra.mxu0 0.0
      %1521 = vmatprep.subr.mxu0 0.0
      %1522 = vmatpush1.msra.mxu0 0.0
      %1523 = vmatprep.subr.mxu0 0.0
      %1524 = vmatpush1.msra.mxu0 0.0
      %1525 = vmatprep.subr.mxu0 0.0
      %1526 = vmatpush1.msra.mxu0 0.0
      %1527 = vmatprep.subr.mxu0 0.0
      %1528 = vmatpush1.msra.mxu0 0.0
      %1529 = vmatprep.subr.mxu0 0.0
      %1530 = vmatpush1.msra.mxu0 0.0
      %1531 = vmatprep.subr.mxu0 0.0
      %1532 = vmatpush1.msra.mxu0 0.0
      %1533 = vmatprep.subr.mxu0 0.0
      %1534 = vmatpush1.msra.mxu0 0.0
      %1535 = vmatprep.subr.mxu0 0.0
      %1536 = vmatpush1.msra.mxu0 0.0
      %1537 = vmatprep.subr.mxu0 0.0
      %1538 = vmatpush1.msra.mxu0 0.0
      %1539 = vmatprep.subr.mxu0 0.0
      %1540 = vmatpush1.msra.mxu0 0.0
      %1541 = vmatprep.subr.mxu0 0.0
      %1542 = vmatpush1.msra.mxu0 0.0
      %1543 = vmatprep.subr.mxu0 0.0
      %1544 = vmatpush1.msra.mxu0 0.0
      %1545 = vmatprep.subr.mxu0 0.0
      %1546 = vmatpush1.msra.mxu0 0.0
      %1547 = vmatprep.subr.mxu0 0.0
      %1548 = vmatpush1.msra.mxu0 0.0
      %1549 = vmatprep.mubr.f32.mxu0 0.0
      %1550 = vmatmul.mubr.f32.gmra.mrb[0].mxu0 %v1480
      %v1551 = vpop.f32.mrb[0].mxu0
      %v1552 = vadd.f32 0.0, %v1551
      %v1553 = vpop.f32.mrb[0].mxu0
      %1554 = vmatprep.mubr.f32.mxu0 0.0
      %1555 = vmatmul.mubr.f32.gmra.mrb[0].mxu0 %v1483
      %v1556 = vpop.f32.mrb[0].mxu0
      %v1557 = vadd.f32 0.0, %v1556
      %v1558 = vpop.f32.mrb[0].mxu0
      %1559 = vdwg.mxu0
      %1560 = vmatprep.subr.mxu0 0.0
      %1561 = vmatpush1.msra.mxu0 %v556
      %1562 = vmatprep.subr.mxu0 0.0
      %1563 = vmatpush1.msra.mxu0 %v557
      %1564 = vmatprep.subr.mxu0 0.0
      %1565 = vmatpush1.msra.mxu0 0.0
      %1566 = vmatprep.subr.mxu0 0.0
      %1567 = vmatpush1.msra.mxu0 0.0
      %1568 = vmatprep.subr.mxu0 0.0
      %1569 = vmatpush1.msra.mxu0 0.0
      %1570 = vmatprep.subr.mxu0 0.0
      %1571 = vmatpush1.msra.mxu0 0.0
      %1572 = vmatprep.subr.mxu0 0.0
      %1573 = vmatpush1.msra.mxu0 0.0
      %1574 = vmatprep.subr.mxu0 0.0
      %1575 = vmatpush1.msra.mxu0 0.0
      %1576 = vmatprep.subr.mxu0 0.0
      %1577 = vmatpush1.msra.mxu0 0.0
      %1578 = vmatprep.subr.mxu0 0.0
      %1579 = vmatpush1.msra.mxu0 0.0
      %1580 = vmatprep.subr.mxu0 0.0
      %1581 = vmatpush1.msra.mxu0 0.0
      %1582 = vmatprep.subr.mxu0 0.0
      %1583 = vmatpush1.msra.mxu0 0.0
      %1584 = vmatprep.subr.mxu0 0.0
      %1585 = vmatpush1.msra.mxu0 0.0
      %1586 = vmatprep.subr.mxu0 0.0
      %1587 = vmatpush1.msra.mxu0 0.0
      %1588 = vmatprep.subr.mxu0 0.0
      %1589 = vmatpush1.msra.mxu0 0.0
      %1590 = vmatprep.subr.mxu0 0.0
      %1591 = vmatpush1.msra.mxu0 0.0
      %1592 = vmatprep.subr.mxu0 0.0
      %1593 = vmatpush1.msra.mxu0 0.0
      %1594 = vmatprep.subr.mxu0 0.0
      %1595 = vmatpush1.msra.mxu0 0.0
      %1596 = vmatprep.subr.mxu0 0.0
      %1597 = vmatpush1.msra.mxu0 0.0
      %1598 = vmatprep.subr.mxu0 0.0
      %1599 = vmatpush1.msra.mxu0 0.0
      %1600 = vmatprep.subr.mxu0 0.0
      %1601 = vmatpush1.msra.mxu0 0.0
      %1602 = vmatprep.subr.mxu0 0.0
      %1603 = vmatpush1.msra.mxu0 0.0
      %1604 = vmatprep.subr.mxu0 0.0
      %1605 = vmatpush1.msra.mxu0 0.0
      %1606 = vmatprep.subr.mxu0 0.0
      %1607 = vmatpush1.msra.mxu0 0.0
      %1608 = vmatprep.subr.mxu0 0.0
      %1609 = vmatpush1.msra.mxu0 0.0
      %1610 = vmatprep.subr.mxu0 0.0
      %1611 = vmatpush1.msra.mxu0 0.0
      %1612 = vmatprep.subr.mxu0 0.0
      %1613 = vmatpush1.msra.mxu0 0.0
      %1614 = vmatprep.subr.mxu0 0.0
      %1615 = vmatpush1.msra.mxu0 0.0
      %1616 = vmatprep.subr.mxu0 0.0
      %1617 = vmatpush1.msra.mxu0 0.0
      %1618 = vmatprep.subr.mxu0 0.0
      %1619 = vmatpush1.msra.mxu0 0.0
      %1620 = vmatprep.subr.mxu0 0.0
      %1621 = vmatpush1.msra.mxu0 0.0
      %1622 = vmatprep.subr.mxu0 0.0
      %1623 = vmatpush1.msra.mxu0 0.0
      %1624 = vmatprep.mubr.f32.mxu0 0.0
      %1625 = vmatmul.mubr.f32.gmra.mrb[0].mxu0 %v1480
      %v1626 = vpop.f32.mrb[0].mxu0
      %v1627 = vadd.f32 0.0, %v1626
      %v1628 = vpop.f32.mrb[0].mxu0
      %1629 = vmatprep.mubr.f32.mxu0 0.0
      %1630 = vmatmul.mubr.f32.gmra.mrb[0].mxu0 %v1483
      %v1631 = vpop.f32.mrb[0].mxu0
      %v1632 = vadd.f32 0.0, %v1631
      %v1633 = vpop.f32.mrb[0].mxu0
      %1634 = vdwg.mxu0
      %1635 = vmatprep.subr.mxu0 0.0
      %1636 = vmatpush1.msra.mxu0 %v558
      %1637 = vmatprep.subr.mxu0 0.0
      %1638 = vmatpush1.msra.mxu0 %v559
      %1639 = vmatprep.subr.mxu0 0.0
      %1640 = vmatpush1.msra.mxu0 0.0
      %1641 = vmatprep.subr.mxu0 0.0
      %1642 = vmatpush1.msra.mxu0 0.0
      %1643 = vmatprep.subr.mxu0 0.0
      %1644 = vmatpush1.msra.mxu0 0.0
      %1645 = vmatprep.subr.mxu0 0.0
      %1646 = vmatpush1.msra.mxu0 0.0
      %1647 = vmatprep.subr.mxu0 0.0
      %1648 = vmatpush1.msra.mxu0 0.0
      %1649 = vmatprep.subr.mxu0 0.0
      %1650 = vmatpush1.msra.mxu0 0.0
      %1651 = vmatprep.subr.mxu0 0.0
      %1652 = vmatpush1.msra.mxu0 0.0
      %1653 = vmatprep.subr.mxu0 0.0
      %1654 = vmatpush1.msra.mxu0 0.0
      %1655 = vmatprep.subr.mxu0 0.0
      %1656 = vmatpush1.msra.mxu0 0.0
      %1657 = vmatprep.subr.mxu0 0.0
      %1658 = vmatpush1.msra.mxu0 0.0
      %1659 = vmatprep.subr.mxu0 0.0
      %1660 = vmatpush1.msra.mxu0 0.0
      %1661 = vmatprep.subr.mxu0 0.0
      %1662 = vmatpush1.msra.mxu0 0.0
      %1663 = vmatprep.subr.mxu0 0.0
      %1664 = vmatpush1.msra.mxu0 0.0
      %1665 = vmatprep.subr.mxu0 0.0
      %1666 = vmatpush1.msra.mxu0 0.0
      %1667 = vmatprep.subr.mxu0 0.0
      %1668 = vmatpush1.msra.mxu0 0.0
      %1669 = vmatprep.subr.mxu0 0.0
      %1670 = vmatpush1.msra.mxu0 0.0
      %1671 = vmatprep.subr.mxu0 0.0
      %1672 = vmatpush1.msra.mxu0 0.0
      %1673 = vmatprep.subr.mxu0 0.0
      %1674 = vmatpush1.msra.mxu0 0.0
      %1675 = vmatprep.subr.mxu0 0.0
      %1676 = vmatpush1.msra.mxu0 0.0
      %1677 = vmatprep.subr.mxu0 0.0
      %1678 = vmatpush1.msra.mxu0 0.0
      %1679 = vmatprep.subr.mxu0 0.0
      %1680 = vmatpush1.msra.mxu0 0.0
      %1681 = vmatprep.subr.mxu0 0.0
      %1682 = vmatpush1.msra.mxu0 0.0
      %1683 = vmatprep.subr.mxu0 0.0
      %1684 = vmatpush1.msra.mxu0 0.0
      %1685 = vmatprep.subr.mxu0 0.0
      %1686 = vmatpush1.msra.mxu0 0.0
      %1687 = vmatprep.subr.mxu0 0.0
      %1688 = vmatpush1.msra.mxu0 0.0
      %1689 = vmatprep.subr.mxu0 0.0
      %1690 = vmatpush1.msra.mxu0 0.0
      %1691 = vmatprep.subr.mxu0 0.0
      %1692 = vmatpush1.msra.mxu0 0.0
      %1693 = vmatprep.subr.mxu0 0.0
      %1694 = vmatpush1.msra.mxu0 0.0
      %1695 = vmatprep.subr.mxu0 0.0
      %1696 = vmatpush1.msra.mxu0 0.0
      %1697 = vmatprep.subr.mxu0 0.0
      %1698 = vmatpush1.msra.mxu0 0.0
      %1699 = vmatprep.mubr.f32.mxu0 0.0
      %1700 = vmatmul.mubr.f32.gmra.mrb[0].mxu0 %v1480
      %v1701 = vpop.f32.mrb[0].mxu0
      %v1702 = vadd.f32 0.0, %v1701
      %v1703 = vpop.f32.mrb[0].mxu0
      %1704 = vmatprep.mubr.f32.mxu0 0.0
      %1705 = vmatmul.mubr.f32.gmra.mrb[0].mxu0 %v1483
      %v1706 = vpop.f32.mrb[0].mxu0
      %v1707 = vadd.f32 0.0, %v1706
      %v1708 = vpop.f32.mrb[0].mxu0
      %1709 = vdwg.mxu0
      %1710 = vmatprep.subr.mxu0 0.0
      %1711 = vmatpush1.msra.mxu0 %v560
      %1712 = vmatprep.subr.mxu0 0.0
      %1713 = vmatpush1.msra.mxu0 %v561
      %1714 = vmatprep.subr.mxu0 0.0
      %1715 = vmatpush1.msra.mxu0 0.0
      %1716 = vmatprep.subr.mxu0 0.0
      %1717 = vmatpush1.msra.mxu0 0.0
      %1718 = vmatprep.subr.mxu0 0.0
      %1719 = vmatpush1.msra.mxu0 0.0
      %1720 = vmatprep.subr.mxu0 0.0
      %1721 = vmatpush1.msra.mxu0 0.0
      %1722 = vmatprep.subr.mxu0 0.0
      %1723 = vmatpush1.msra.mxu0 0.0
      %1724 = vmatprep.subr.mxu0 0.0
      %1725 = vmatpush1.msra.mxu0 0.0
      %1726 = vmatprep.subr.mxu0 0.0
      %1727 = vmatpush1.msra.mxu0 0.0
      %1728 = vmatprep.subr.mxu0 0.0
      %1729 = vmatpush1.msra.mxu0 0.0
      %1730 = vmatprep.subr.mxu0 0.0
      %1731 = vmatpush1.msra.mxu0 0.0
      %1732 = vmatprep.subr.mxu0 0.0
      %1733 = vmatpush1.msra.mxu0 0.0
      %1734 = vmatprep.subr.mxu0 0.0
      %1735 = vmatpush1.msra.mxu0 0.0
      %1736 = vmatprep.subr.mxu0 0.0
      %1737 = vmatpush1.msra.mxu0 0.0
      %1738 = vmatprep.subr.mxu0 0.0
      %1739 = vmatpush1.msra.mxu0 0.0
      %1740 = vmatprep.subr.mxu0 0.0
      %1741 = vmatpush1.msra.mxu0 0.0
      %1742 = vmatprep.subr.mxu0 0.0
      %1743 = vmatpush1.msra.mxu0 0.0
      %1744 = vmatprep.subr.mxu0 0.0
      %1745 = vmatpush1.msra.mxu0 0.0
      %1746 = vmatprep.subr.mxu0 0.0
      %1747 = vmatpush1.msra.mxu0 0.0
      %1748 = vmatprep.subr.mxu0 0.0
      %1749 = vmatpush1.msra.mxu0 0.0
      %1750 = vmatprep.subr.mxu0 0.0
      %1751 = vmatpush1.msra.mxu0 0.0
      %1752 = vmatprep.subr.mxu0 0.0
      %1753 = vmatpush1.msra.mxu0 0.0
      %1754 = vmatprep.subr.mxu0 0.0
      %1755 = vmatpush1.msra.mxu0 0.0
      %1756 = vmatprep.subr.mxu0 0.0
      %1757 = vmatpush1.msra.mxu0 0.0
      %1758 = vmatprep.subr.mxu0 0.0
      %1759 = vmatpush1.msra.mxu0 0.0
      %1760 = vmatprep.subr.mxu0 0.0
      %1761 = vmatpush1.msra.mxu0 0.0
      %1762 = vmatprep.subr.mxu0 0.0
      %1763 = vmatpush1.msra.mxu0 0.0
      %1764 = vmatprep.subr.mxu0 0.0
      %1765 = vmatpush1.msra.mxu0 0.0
      %1766 = vmatprep.subr.mxu0 0.0
      %1767 = vmatpush1.msra.mxu0 0.0
      %1768 = vmatprep.subr.mxu0 0.0
      %1769 = vmatpush1.msra.mxu0 0.0
      %1770 = vmatprep.subr.mxu0 0.0
      %1771 = vmatpush1.msra.mxu0 0.0
      %1772 = vmatprep.subr.mxu0 0.0
      %1773 = vmatpush1.msra.mxu0 0.0
      %1774 = vmatprep.mubr.f32.mxu0 0.0
      %1775 = vmatmul.mubr.f32.gmra.mrb[0].mxu0 %v1480
      %v1776 = vpop.f32.mrb[0].mxu0
      %v1777 = vadd.f32 0.0, %v1776
      %v1778 = vpop.f32.mrb[0].mxu0
      %1779 = vmatprep.mubr.f32.mxu0 0.0
      %1780 = vmatmul.mubr.f32.gmra.mrb[0].mxu0 %v1483
      %v1781 = vpop.f32.mrb[0].mxu0
      %v1782 = vadd.f32 0.0, %v1781
      %v1783 = vpop.f32.mrb[0].mxu0
      %1784 = vdwg.mxu0
      %1785 = vmatprep.subr.mxu0 0.0
      %1786 = vmatpush1.msra.mxu0 %v562
      %1787 = vmatprep.subr.mxu0 0.0
      %1788 = vmatpush1.msra.mxu0 %v563
      %1789 = vmatprep.subr.mxu0 0.0
      %1790 = vmatpush1.msra.mxu0 0.0
      %1791 = vmatprep.subr.mxu0 0.0
      %1792 = vmatpush1.msra.mxu0 0.0
      %1793 = vmatprep.subr.mxu0 0.0
      %1794 = vmatpush1.msra.mxu0 0.0
      %1795 = vmatprep.subr.mxu0 0.0
      %1796 = vmatpush1.msra.mxu0 0.0
      %1797 = vmatprep.subr.mxu0 0.0
      %1798 = vmatpush1.msra.mxu0 0.0
      %1799 = vmatprep.subr.mxu0 0.0
      %1800 = vmatpush1.msra.mxu0 0.0
      %1801 = vmatprep.subr.mxu0 0.0
      %1802 = vmatpush1.msra.mxu0 0.0
      %1803 = vmatprep.subr.mxu0 0.0
      %1804 = vmatpush1.msra.mxu0 0.0
      %1805 = vmatprep.subr.mxu0 0.0
      %1806 = vmatpush1.msra.mxu0 0.0
      %1807 = vmatprep.subr.mxu0 0.0
      %1808 = vmatpush1.msra.mxu0 0.0
      %1809 = vmatprep.subr.mxu0 0.0
      %1810 = vmatpush1.msra.mxu0 0.0
      %1811 = vmatprep.subr.mxu0 0.0
      %1812 = vmatpush1.msra.mxu0 0.0
      %1813 = vmatprep.subr.mxu0 0.0
      %1814 = vmatpush1.msra.mxu0 0.0
      %1815 = vmatprep.subr.mxu0 0.0
      %1816 = vmatpush1.msra.mxu0 0.0
      %1817 = vmatprep.subr.mxu0 0.0
      %1818 = vmatpush1.msra.mxu0 0.0
      %1819 = vmatprep.subr.mxu0 0.0
      %1820 = vmatpush1.msra.mxu0 0.0
      %1821 = vmatprep.subr.mxu0 0.0
      %1822 = vmatpush1.msra.mxu0 0.0
      %1823 = vmatprep.subr.mxu0 0.0
      %1824 = vmatpush1.msra.mxu0 0.0
      %1825 = vmatprep.subr.mxu0 0.0
      %1826 = vmatpush1.msra.mxu0 0.0
      %1827 = vmatprep.subr.mxu0 0.0
      %1828 = vmatpush1.msra.mxu0 0.0
      %1829 = vmatprep.subr.mxu0 0.0
      %1830 = vmatpush1.msra.mxu0 0.0
      %1831 = vmatprep.subr.mxu0 0.0
      %1832 = vmatpush1.msra.mxu0 0.0
      %1833 = vmatprep.subr.mxu0 0.0
      %1834 = vmatpush1.msra.mxu0 0.0
      %1835 = vmatprep.subr.mxu0 0.0
      %1836 = vmatpush1.msra.mxu0 0.0
      %1837 = vmatprep.subr.mxu0 0.0
      %1838 = vmatpush1.msra.mxu0 0.0
      %1839 = vmatprep.subr.mxu0 0.0
      %1840 = vmatpush1.msra.mxu0 0.0
      %1841 = vmatprep.subr.mxu0 0.0
      %1842 = vmatpush1.msra.mxu0 0.0
      %1843 = vmatprep.subr.mxu0 0.0
      %1844 = vmatpush1.msra.mxu0 0.0
      %1845 = vmatprep.subr.mxu0 0.0
      %1846 = vmatpush1.msra.mxu0 0.0
      %1847 = vmatprep.subr.mxu0 0.0
      %1848 = vmatpush1.msra.mxu0 0.0
      %1849 = vmatprep.mubr.f32.mxu0 0.0
      %1850 = vmatmul.mubr.f32.gmra.mrb[0].mxu0 %v1480
      %v1851 = vpop.f32.mrb[0].mxu0
      %v1852 = vadd.f32 0.0, %v1851
      %v1853 = vpop.f32.mrb[0].mxu0
      %1854 = vmatprep.mubr.f32.mxu0 0.0
      %1855 = vmatmul.mubr.f32.gmra.mrb[0].mxu0 %v1483
      %v1856 = vpop.f32.mrb[0].mxu0
      %v1857 = vadd.f32 0.0, %v1856
      %v1858 = vpop.f32.mrb[0].mxu0
      %1859 = vdwg.mxu0
      %1860 = vmatprep.subr.mxu0 0.0
      %1861 = vmatpush1.msra.mxu0 %v564
      %1862 = vmatprep.subr.mxu0 0.0
      %1863 = vmatpush1.msra.mxu0 %v565
      %1864 = vmatprep.subr.mxu0 0.0
      %1865 = vmatpush1.msra.mxu0 0.0
      %1866 = vmatprep.subr.mxu0 0.0
      %1867 = vmatpush1.msra.mxu0 0.0
      %1868 = vmatprep.subr.mxu0 0.0
      %1869 = vmatpush1.msra.mxu0 0.0
      %1870 = vmatprep.subr.mxu0 0.0
      %1871 = vmatpush1.msra.mxu0 0.0
      %1872 = vmatprep.subr.mxu0 0.0
      %1873 = vmatpush1.msra.mxu0 0.0
      %1874 = vmatprep.subr.mxu0 0.0
      %1875 = vmatpush1.msra.mxu0 0.0
      %1876 = vmatprep.subr.mxu0 0.0
      %1877 = vmatpush1.msra.mxu0 0.0
      %1878 = vmatprep.subr.mxu0 0.0
      %1879 = vmatpush1.msra.mxu0 0.0
      %1880 = vmatprep.subr.mxu0 0.0
      %1881 = vmatpush1.msra.mxu0 0.0
      %1882 = vmatprep.subr.mxu0 0.0
      %1883 = vmatpush1.msra.mxu0 0.0
      %1884 = vmatprep.subr.mxu0 0.0
      %1885 = vmatpush1.msra.mxu0 0.0
      %1886 = vmatprep.subr.mxu0 0.0
      %1887 = vmatpush1.msra.mxu0 0.0
      %1888 = vmatprep.subr.mxu0 0.0
      %1889 = vmatpush1.msra.mxu0 0.0
      %1890 = vmatprep.subr.mxu0 0.0
      %1891 = vmatpush1.msra.mxu0 0.0
      %1892 = vmatprep.subr.mxu0 0.0
      %1893 = vmatpush1.msra.mxu0 0.0
      %1894 = vmatprep.subr.mxu0 0.0
      %1895 = vmatpush1.msra.mxu0 0.0
      %1896 = vmatprep.subr.mxu0 0.0
      %1897 = vmatpush1.msra.mxu0 0.0
      %1898 = vmatprep.subr.mxu0 0.0
      %1899 = vmatpush1.msra.mxu0 0.0
      %1900 = vmatprep.subr.mxu0 0.0
      %1901 = vmatpush1.msra.mxu0 0.0
      %1902 = vmatprep.subr.mxu0 0.0
      %1903 = vmatpush1.msra.mxu0 0.0
      %1904 = vmatprep.subr.mxu0 0.0
      %1905 = vmatpush1.msra.mxu0 0.0
      %1906 = vmatprep.subr.mxu0 0.0
      %1907 = vmatpush1.msra.mxu0 0.0
      %1908 = vmatprep.subr.mxu0 0.0
      %1909 = vmatpush1.msra.mxu0 0.0
      %1910 = vmatprep.subr.mxu0 0.0
      %1911 = vmatpush1.msra.mxu0 0.0
      %1912 = vmatprep.subr.mxu0 0.0
      %1913 = vmatpush1.msra.mxu0 0.0
      %1914 = vmatprep.subr.mxu0 0.0
      %1915 = vmatpush1.msra.mxu0 0.0
      %1916 = vmatprep.subr.mxu0 0.0
      %1917 = vmatpush1.msra.mxu0 0.0
      %1918 = vmatprep.subr.mxu0 0.0
      %1919 = vmatpush1.msra.mxu0 0.0
      %1920 = vmatprep.subr.mxu0 0.0
      %1921 = vmatpush1.msra.mxu0 0.0
      %1922 = vmatprep.subr.mxu0 0.0
      %1923 = vmatpush1.msra.mxu0 0.0
      %1924 = vmatprep.mubr.f32.mxu0 0.0
      %1925 = vmatmul.mubr.f32.gmra.mrb[0].mxu0 %v1480
      %v1926 = vpop.f32.mrb[0].mxu0
      %v1927 = vadd.f32 0.0, %v1926
      %v1928 = vpop.f32.mrb[0].mxu0
      %1929 = vmatprep.mubr.f32.mxu0 0.0
      %1930 = vmatmul.mubr.f32.gmra.mrb[0].mxu0 %v1483
      %v1931 = vpop.f32.mrb[0].mxu0
      %v1932 = vadd.f32 0.0, %v1931
      %v1933 = vpop.f32.mrb[0].mxu0
      %1934 = vdwg.mxu0
      %v1935 = vsub.f32 %v640, %v1096
      %v1936 = vsub.f32 %v645, %v1101
      %v1937 = vsub.f32 %v715, %v1171
      %v1938 = vsub.f32 %v720, %v1176
      %v1939 = vsub.f32 %v790, %v1246
      %v1940 = vsub.f32 %v795, %v1251
      %v1941 = vsub.f32 %v865, %v1321
      %v1942 = vsub.f32 %v870, %v1326
      %v1943 = vsub.f32 %v940, %v1396
      %v1944 = vsub.f32 %v945, %v1401
      %v1945 = vsub.f32 %v1015, %v1471
      %v1946 = vsub.f32 %v1020, %v1476
      %v1947 = vsub.f32 %v1552, %v640
      %v1948 = vsub.f32 %v1557, %v645
      %v1949 = vsub.f32 %v1627, %v715
      %v1950 = vsub.f32 %v1632, %v720
      %v1951 = vsub.f32 %v1702, %v790
      %v1952 = vsub.f32 %v1707, %v795
      %v1953 = vsub.f32 %v1777, %v865
      %v1954 = vsub.f32 %v1782, %v870
      %v1955 = vsub.f32 %v1852, %v940
      %v1956 = vsub.f32 %v1857, %v945
      %v1957 = vsub.f32 %v1927, %v1015
      %v1958 = vsub.f32 %v1932, %v1020
      %v1959 = vsub.f32 %v1947, %v1096
      %v1960 = vsub.f32 %v1948, %v1101
      %v1961 = vsub.f32 %v1949, %v1171
      %v1962 = vsub.f32 %v1950, %v1176
      %v1963 = vsub.f32 %v1951, %v1246
      %v1964 = vsub.f32 %v1952, %v1251
      %v1965 = vsub.f32 %v1953, %v1321
      %v1966 = vsub.f32 %v1954, %v1326
      %v1967 = vsub.f32 %v1955, %v1396
      %v1968 = vsub.f32 %v1956, %v1401
      %v1969 = vsub.f32 %v1957, %v1471
      %v1970 = vsub.f32 %v1958, %v1476
      %v1971 = vld [vmem:[%s6] sm:$0xff]
      %v1972 = vld [vmem:[%s6 + $0x8] sm:$0xff]
      %v1973 = vld [vmem:[%s7] sm:$0xff]
      %v1974 = vld [vmem:[%s7 + $0x8] sm:$0xff]
      %v1976 = vsel %vm566, %v1959, 0
      %v1979 = vsel %vm566, %v1960, 0
      %v1982 = vsel %vm566, %v1961, 0
      %v1985 = vsel %vm566, %v1962, 0
      %v1988 = vsel %vm566, %v1963, 0
      %v1991 = vsel %vm566, %v1964, 0
      %v1994 = vsel %vm566, %v1965, 0
      %v1997 = vsel %vm566, %v1966, 0
      %v2000 = vsel %vm566, %v1967, 0
      %v2003 = vsel %vm566, %v1968, 0
      %v2006 = vsel %vm566, %v1969, 0
      %v2009 = vsel %vm566, %v1970, 0
      %2011 = vmatprep.subr.mxu0 0.0
      %2012 = vmatpush1.msra.mxu0 %v1973
      %2013 = vmatprep.subr.mxu0 0.0
      %2014 = vmatpush1.msra.mxu0 %v1974
      %2015 = vmatprep.subr.mxu0 0.0
      %2016 = vmatpush1.msra.mxu0 0.0
      %2017 = vmatprep.subr.mxu0 0.0
      %2018 = vmatpush1.msra.mxu0 0.0
      %2019 = vmatprep.subr.mxu0 0.0
      %2020 = vmatpush1.msra.mxu0 0.0
      %2021 = vmatprep.subr.mxu0 0.0
      %2022 = vmatpush1.msra.mxu0 0.0
      %2023 = vmatprep.subr.mxu0 0.0
      %2024 = vmatpush1.msra.mxu0 0.0
      %2025 = vmatprep.subr.mxu0 0.0
      %2026 = vmatpush1.msra.mxu0 0.0
      %2027 = vmatprep.subr.mxu0 0.0
      %2028 = vmatpush1.msra.mxu0 0.0
      %2029 = vmatprep.subr.mxu0 0.0
      %2030 = vmatpush1.msra.mxu0 0.0
      %2031 = vmatprep.subr.mxu0 0.0
      %2032 = vmatpush1.msra.mxu0 0.0
      %2033 = vmatprep.subr.mxu0 0.0
      %2034 = vmatpush1.msra.mxu0 0.0
      %2035 = vmatprep.subr.mxu0 0.0
      %2036 = vmatpush1.msra.mxu0 0.0
      %2037 = vmatprep.subr.mxu0 0.0
      %2038 = vmatpush1.msra.mxu0 0.0
      %2039 = vmatprep.subr.mxu0 0.0
      %2040 = vmatpush1.msra.mxu0 0.0
      %2041 = vmatprep.subr.mxu0 0.0
      %2042 = vmatpush1.msra.mxu0 0.0
      %2043 = vmatprep.subr.mxu0 0.0
      %2044 = vmatpush1.msra.mxu0 0.0
      %2045 = vmatprep.subr.mxu0 0.0
      %2046 = vmatpush1.msra.mxu0 0.0
      %2047 = vmatprep.subr.mxu0 0.0
      %2048 = vmatpush1.msra.mxu0 0.0
      %2049 = vmatprep.subr.mxu0 0.0
      %2050 = vmatpush1.msra.mxu0 0.0
      %2051 = vmatprep.subr.mxu0 0.0
      %2052 = vmatpush1.msra.mxu0 0.0
      %2053 = vmatprep.subr.mxu0 0.0
      %2054 = vmatpush1.msra.mxu0 0.0
      %2055 = vmatprep.subr.mxu0 0.0
      %2056 = vmatpush1.msra.mxu0 0.0
      %2057 = vmatprep.subr.mxu0 0.0
      %2058 = vmatpush1.msra.mxu0 0.0
      %2059 = vmatprep.subr.mxu0 0.0
      %2060 = vmatpush1.msra.mxu0 0.0
      %2061 = vmatprep.subr.mxu0 0.0
      %2062 = vmatpush1.msra.mxu0 0.0
      %2063 = vmatprep.subr.mxu0 0.0
      %2064 = vmatpush1.msra.mxu0 0.0
      %2065 = vmatprep.subr.mxu0 0.0
      %2066 = vmatpush1.msra.mxu0 0.0
      %2067 = vmatprep.subr.mxu0 0.0
      %2068 = vmatpush1.msra.mxu0 0.0
      %2069 = vmatprep.subr.mxu0 0.0
      %2070 = vmatpush1.msra.mxu0 0.0
      %2071 = vmatprep.subr.mxu0 0.0
      %2072 = vmatpush1.msra.mxu0 0.0
      %2073 = vmatprep.subr.mxu0 0.0
      %2074 = vmatpush1.msra.mxu0 0.0
      %2075 = vmatprep.mubr.f32.mxu0 0.0
      %2076 = vmatmul.mubr.f32.gmra.mrb[0].mxu0 %v1976
      %v2077 = vpop.f32.mrb[0].mxu0
      %v2078 = vadd.f32 0.0, %v2077
      %v2079 = vpop.f32.mrb[0].mxu0
      %2080 = vmatprep.mubr.f32.mxu0 0.0
      %2081 = vmatmul.mubr.f32.gmra.mrb[0].mxu0 %v1979
      %v2082 = vpop.f32.mrb[0].mxu0
      %v2083 = vadd.f32 0.0, %v2082
      %v2084 = vpop.f32.mrb[0].mxu0
      %2085 = vmatprep.mubr.f32.mxu0 0.0
      %2086 = vmatmul.mubr.f32.gmra.mrb[0].mxu0 %v1982
      %v2087 = vpop.f32.mrb[0].mxu0
      %v2088 = vadd.f32 0.0, %v2087
      %v2089 = vpop.f32.mrb[0].mxu0
      %2090 = vmatprep.mubr.f32.mxu0 0.0
      %2091 = vmatmul.mubr.f32.gmra.mrb[0].mxu0 %v1985
      %v2092 = vpop.f32.mrb[0].mxu0
      %v2093 = vadd.f32 0.0, %v2092
      %v2094 = vpop.f32.mrb[0].mxu0
      %2095 = vmatprep.mubr.f32.mxu0 0.0
      %2096 = vmatmul.mubr.f32.gmra.mrb[0].mxu0 %v1988
      %v2097 = vpop.f32.mrb[0].mxu0
      %v2098 = vadd.f32 0.0, %v2097
      %v2099 = vpop.f32.mrb[0].mxu0
      %2100 = vmatprep.mubr.f32.mxu0 0.0
      %2101 = vmatmul.mubr.f32.gmra.mrb[0].mxu0 %v1991
      %v2102 = vpop.f32.mrb[0].mxu0
      %v2103 = vadd.f32 0.0, %v2102
      %v2104 = vpop.f32.mrb[0].mxu0
      %2105 = vmatprep.mubr.f32.mxu0 0.0
      %2106 = vmatmul.mubr.f32.gmra.mrb[0].mxu0 %v1994
      %v2107 = vpop.f32.mrb[0].mxu0
      %v2108 = vadd.f32 0.0, %v2107
      %v2109 = vpop.f32.mrb[0].mxu0
      %2110 = vmatprep.mubr.f32.mxu0 0.0
      %2111 = vmatmul.mubr.f32.gmra.mrb[0].mxu0 %v1997
      %v2112 = vpop.f32.mrb[0].mxu0
      %v2113 = vadd.f32 0.0, %v2112
      %v2114 = vpop.f32.mrb[0].mxu0
      %2115 = vmatprep.mubr.f32.mxu0 0.0
      %2116 = vmatmul.mubr.f32.gmra.mrb[0].mxu0 %v2000
      %v2117 = vpop.f32.mrb[0].mxu0
      %v2118 = vadd.f32 0.0, %v2117
      %v2119 = vpop.f32.mrb[0].mxu0
      %2120 = vmatprep.mubr.f32.mxu0 0.0
      %2121 = vmatmul.mubr.f32.gmra.mrb[0].mxu0 %v2003
      %v2122 = vpop.f32.mrb[0].mxu0
      %v2123 = vadd.f32 0.0, %v2122
      %v2124 = vpop.f32.mrb[0].mxu0
      %2125 = vmatprep.mubr.f32.mxu0 0.0
      %2126 = vmatmul.mubr.f32.gmra.mrb[0].mxu0 %v2006
      %v2127 = vpop.f32.mrb[0].mxu0
      %v2128 = vadd.f32 0.0, %v2127
      %v2129 = vpop.f32.mrb[0].mxu0
      %2130 = vmatprep.mubr.f32.mxu0 0.0
      %2131 = vmatmul.mubr.f32.gmra.mrb[0].mxu0 %v2009
      %v2132 = vpop.f32.mrb[0].mxu0
      %v2133 = vadd.f32 0.0, %v2132
      %v2134 = vpop.f32.mrb[0].mxu0
      %2135 = vdwg.mxu0
      %v2137 = vsel %vm566, %v1935, 0
      %v2140 = vsel %vm566, %v1936, 0
      %v2143 = vsel %vm566, %v1937, 0
      %v2146 = vsel %vm566, %v1938, 0
      %v2149 = vsel %vm566, %v1939, 0
      %v2152 = vsel %vm566, %v1940, 0
      %v2155 = vsel %vm566, %v1941, 0
      %v2158 = vsel %vm566, %v1942, 0
      %v2161 = vsel %vm566, %v1943, 0
      %v2164 = vsel %vm566, %v1944, 0
      %v2167 = vsel %vm566, %v1945, 0
      %v2170 = vsel %vm566, %v1946, 0
      %2172 = vmatprep.subr.mxu0 0.0
      %2173 = vmatpush1.msra.mxu0 %v1971
      %2174 = vmatprep.subr.mxu0 0.0
      %2175 = vmatpush1.msra.mxu0 %v1972
      %2176 = vmatprep.subr.mxu0 0.0
      %2177 = vmatpush1.msra.mxu0 0.0
      %2178 = vmatprep.subr.mxu0 0.0
      %2179 = vmatpush1.msra.mxu0 0.0
      %2180 = vmatprep.subr.mxu0 0.0
      %2181 = vmatpush1.msra.mxu0 0.0
      %2182 = vmatprep.subr.mxu0 0.0
      %2183 = vmatpush1.msra.mxu0 0.0
      %2184 = vmatprep.subr.mxu0 0.0
      %2185 = vmatpush1.msra.mxu0 0.0
      %2186 = vmatprep.subr.mxu0 0.0
      %2187 = vmatpush1.msra.mxu0 0.0
      %2188 = vmatprep.subr.mxu0 0.0
      %2189 = vmatpush1.msra.mxu0 0.0
      %2190 = vmatprep.subr.mxu0 0.0
      %2191 = vmatpush1.msra.mxu0 0.0
      %2192 = vmatprep.subr.mxu0 0.0
      %2193 = vmatpush1.msra.mxu0 0.0
      %2194 = vmatprep.subr.mxu0 0.0
      %2195 = vmatpush1.msra.mxu0 0.0
      %2196 = vmatprep.subr.mxu0 0.0
      %2197 = vmatpush1.msra.mxu0 0.0
      %2198 = vmatprep.subr.mxu0 0.0
      %2199 = vmatpush1.msra.mxu0 0.0
      %2200 = vmatprep.subr.mxu0 0.0
      %2201 = vmatpush1.msra.mxu0 0.0
      %2202 = vmatprep.subr.mxu0 0.0
      %2203 = vmatpush1.msra.mxu0 0.0
      %2204 = vmatprep.subr.mxu0 0.0
      %2205 = vmatpush1.msra.mxu0 0.0
      %2206 = vmatprep.subr.mxu0 0.0
      %2207 = vmatpush1.msra.mxu0 0.0
      %2208 = vmatprep.subr.mxu0 0.0
      %2209 = vmatpush1.msra.mxu0 0.0
      %2210 = vmatprep.subr.mxu0 0.0
      %2211 = vmatpush1.msra.mxu0 0.0
      %2212 = vmatprep.subr.mxu0 0.0
      %2213 = vmatpush1.msra.mxu0 0.0
      %2214 = vmatprep.subr.mxu0 0.0
      %2215 = vmatpush1.msra.mxu0 0.0
      %2216 = vmatprep.subr.mxu0 0.0
      %2217 = vmatpush1.msra.mxu0 0.0
      %2218 = vmatprep.subr.mxu0 0.0
      %2219 = vmatpush1.msra.mxu0 0.0
      %2220 = vmatprep.subr.mxu0 0.0
      %2221 = vmatpush1.msra.mxu0 0.0
      %2222 = vmatprep.subr.mxu0 0.0
      %2223 = vmatpush1.msra.mxu0 0.0
      %2224 = vmatprep.subr.mxu0 0.0
      %2225 = vmatpush1.msra.mxu0 0.0
      %2226 = vmatprep.subr.mxu0 0.0
      %2227 = vmatpush1.msra.mxu0 0.0
      %2228 = vmatprep.subr.mxu0 0.0
      %2229 = vmatpush1.msra.mxu0 0.0
      %2230 = vmatprep.subr.mxu0 0.0
      %2231 = vmatpush1.msra.mxu0 0.0
      %2232 = vmatprep.subr.mxu0 0.0
      %2233 = vmatpush1.msra.mxu0 0.0
      %2234 = vmatprep.subr.mxu0 0.0
      %2235 = vmatpush1.msra.mxu0 0.0
      %2236 = vmatprep.mubr.f32.mxu0 0.0
      %2237 = vmatmul.mubr.f32.gmra.mrb[0].mxu0 %v2137
      %v2238 = vpop.f32.mrb[0].mxu0
      %v2239 = vadd.f32 %v2078, %v2238
      %v2240 = vpop.f32.mrb[0].mxu0
      %2241 = vmatprep.mubr.f32.mxu0 0.0
      %2242 = vmatmul.mubr.f32.gmra.mrb[0].mxu0 %v2140
      %v2243 = vpop.f32.mrb[0].mxu0
      %v2244 = vadd.f32 %v2083, %v2243
      %v2245 = vpop.f32.mrb[0].mxu0
      %2246 = vmatprep.mubr.f32.mxu0 0.0
      %2247 = vmatmul.mubr.f32.gmra.mrb[0].mxu0 %v2143
      %v2248 = vpop.f32.mrb[0].mxu0
      %v2249 = vadd.f32 %v2088, %v2248
      %v2250 = vpop.f32.mrb[0].mxu0
      %2251 = vmatprep.mubr.f32.mxu0 0.0
      %2252 = vmatmul.mubr.f32.gmra.mrb[0].mxu0 %v2146
      %v2253 = vpop.f32.mrb[0].mxu0
      %v2254 = vadd.f32 %v2093, %v2253
      %v2255 = vpop.f32.mrb[0].mxu0
      %2256 = vmatprep.mubr.f32.mxu0 0.0
      %2257 = vmatmul.mubr.f32.gmra.mrb[0].mxu0 %v2149
      %v2258 = vpop.f32.mrb[0].mxu0
      %v2259 = vadd.f32 %v2098, %v2258
      %v2260 = vpop.f32.mrb[0].mxu0
      %2261 = vmatprep.mubr.f32.mxu0 0.0
      %2262 = vmatmul.mubr.f32.gmra.mrb[0].mxu0 %v2152
      %v2263 = vpop.f32.mrb[0].mxu0
      %v2264 = vadd.f32 %v2103, %v2263
      %v2265 = vpop.f32.mrb[0].mxu0
      %2266 = vmatprep.mubr.f32.mxu0 0.0
      %2267 = vmatmul.mubr.f32.gmra.mrb[0].mxu0 %v2155
      %v2268 = vpop.f32.mrb[0].mxu0
      %v2269 = vadd.f32 %v2108, %v2268
      %v2270 = vpop.f32.mrb[0].mxu0
      %2271 = vmatprep.mubr.f32.mxu0 0.0
      %2272 = vmatmul.mubr.f32.gmra.mrb[0].mxu0 %v2158
      %v2273 = vpop.f32.mrb[0].mxu0
      %v2274 = vadd.f32 %v2113, %v2273
      %v2275 = vpop.f32.mrb[0].mxu0
      %2276 = vmatprep.mubr.f32.mxu0 0.0
      %2277 = vmatmul.mubr.f32.gmra.mrb[0].mxu0 %v2161
      %v2278 = vpop.f32.mrb[0].mxu0
      %v2279 = vadd.f32 %v2118, %v2278
      %v2280 = vpop.f32.mrb[0].mxu0
      %2281 = vmatprep.mubr.f32.mxu0 0.0
      %2282 = vmatmul.mubr.f32.gmra.mrb[0].mxu0 %v2164
      %v2283 = vpop.f32.mrb[0].mxu0
      %v2284 = vadd.f32 %v2123, %v2283
      %v2285 = vpop.f32.mrb[0].mxu0
      %2286 = vmatprep.mubr.f32.mxu0 0.0
      %2287 = vmatmul.mubr.f32.gmra.mrb[0].mxu0 %v2167
      %v2288 = vpop.f32.mrb[0].mxu0
      %v2289 = vadd.f32 %v2128, %v2288
      %v2290 = vpop.f32.mrb[0].mxu0
      %2291 = vmatprep.mubr.f32.mxu0 0.0
      %2292 = vmatmul.mubr.f32.gmra.mrb[0].mxu0 %v2170
      %v2293 = vpop.f32.mrb[0].mxu0
      %v2294 = vadd.f32 %v2133, %v2293
      %v2295 = vpop.f32.mrb[0].mxu0
      %2296 = vdwg.mxu0
      %v2297 = vld [vmem:[%s436] sm:$0xff]
      %v2298 = vld [vmem:[%s436 + $0x8] sm:$0xff]
      %v2299 = vld [vmem:[%s436 + $0x10] sm:$0xff]
      %v2300 = vld [vmem:[%s436 + $0x18] sm:$0xff]
      %v2301 = vld [vmem:[%s436 + $0x20] sm:$0xff]
      %v2302 = vld [vmem:[%s436 + $0x28] sm:$0xff]
      %v2303 = vld [vmem:[%s436 + $0x30] sm:$0xff]
      %v2304 = vld [vmem:[%s436 + $0x38] sm:$0xff]
      %v2305 = vld [vmem:[%s436 + $0x40] sm:$0xff]
      %v2306 = vld [vmem:[%s436 + $0x48] sm:$0xff]
      %v2307 = vld [vmem:[%s436 + $0x50] sm:$0xff]
      %v2308 = vld [vmem:[%s436 + $0x58] sm:$0xff]
      %v2309 = vmul.f32 %v2239, %v2297
      %v2310 = vmul.f32 %v2244, %v2298
      %v2311 = vmul.f32 %v2249, %v2299
      %v2312 = vmul.f32 %v2254, %v2300
      %v2313 = vmul.f32 %v2259, %v2301
      %v2314 = vmul.f32 %v2264, %v2302
      %v2315 = vmul.f32 %v2269, %v2303
      %v2316 = vmul.f32 %v2274, %v2304
      %v2317 = vmul.f32 %v2279, %v2305
      %v2318 = vmul.f32 %v2284, %v2306
      %v2319 = vmul.f32 %v2289, %v2307
      %v2320 = vmul.f32 %v2294, %v2308
      %vm2321 = vcmask 261120
      %2322 = vst.msk [vmem:[%s446] sm:$0xff] %vm2321, %v2309
      %2323 = vst.msk [vmem:[%s446 + $0x8] sm:$0xff] %vm2321, %v2310
      %2324 = vst.msk [vmem:[%s446 + $0x10] sm:$0xff] %vm2321, %v2311
      %2325 = vst.msk [vmem:[%s446 + $0x18] sm:$0xff] %vm2321, %v2312
      %2326 = vst.msk [vmem:[%s446 + $0x20] sm:$0xff] %vm2321, %v2313
      %2327 = vst.msk [vmem:[%s446 + $0x28] sm:$0xff] %vm2321, %v2314
      %2328 = vst.msk [vmem:[%s446 + $0x30] sm:$0xff] %vm2321, %v2315
      %2329 = vst.msk [vmem:[%s446 + $0x38] sm:$0xff] %vm2321, %v2316
      %2330 = vst.msk [vmem:[%s446 + $0x40] sm:$0xff] %vm2321, %v2317
      %2331 = vst.msk [vmem:[%s446 + $0x48] sm:$0xff] %vm2321, %v2318
      %2332 = vst.msk [vmem:[%s446 + $0x50] sm:$0xff] %vm2321, %v2319
      %2333 = vst.msk [vmem:[%s446 + $0x58] sm:$0xff] %vm2321, %v2320
      %s2334 = smul.u32 12, %s25
      %p2335 = scmp.lt.s32.totalorder %s24, 3
      %s2336 = scalar_select %p2335, %s24, 3
      %p2337 = scmp.lt.s32.totalorder %s2334, 23
      %s2338 = scalar_select %p2337, %s2334, 23
      %s2339 = smul.addr %s2336, 24
      %s2340 = sadd.s32 %s2338, %s2339
      %s2341 = smul.addr %s2340, 8
      %s2342 = scalar_lea.vmem %s9, %s2341
      // Predicated region
      $region57: #{auv_forward.1} parent=55 // pred_check
        %p2343 = pneg %p266
      $region58: #{auv_forward.1} parent=55 // pred_check_branch
        %2345 = sbr.rel (%p2343) target = $region60
      $region59: #{auv_forward.1} parent=55 // pred_region
        %s2346 = smul.u32 12, %s25
      $region60: #{auv_forward.1} parent=55 // pred_fallthru
        _
    $region56: #{auv_forward.1} parent=5 // pred_fallthru
      _
    %p2347 = scmp.le.s32.totalorder 2, %s15
    // Predicated region
    $region61: #{auv_forward.1} parent=5 // pred_check
      %p2348 = pneg %p2347
    $region62: #{auv_forward.1} parent=5 // pred_check_branch
      %2350 = sbr.rel (%p2348) target = $region64
    $region63: #{auv_forward.1} parent=5 // pred_region
      %s2351 = ssub.s32 %s15, 2
      // Predicated region
      $region65: #{auv_forward.1} parent=63 // pred_check
        %p2352 = pneg %p272
      $region66: #{auv_forward.1} parent=63 // pred_check_branch
        %2354 = sbr.rel (%p2352) target = $region68
      $region67: #{auv_forward.1} parent=63 // pred_region
        %s2355 = smul.u32 12, %s27
        %p2356 = scmp.lt.s32.totalorder %s26, 3
        %s2357 = scalar_select %p2356, %s26, 3
        %p2358 = scmp.lt.s32.totalorder %s2355, 23
        %s2359 = scalar_select %p2358, %s2355, 23
        %s2360 = smul.addr %s2357, 24
        %s2361 = sadd.s32 %s2359, %s2360
        %s2362 = smul.addr %s2361, 8
        %s2363 = scalar_lea.vmem %s9, %s2362
      $region68: #{auv_forward.1} parent=63 // pred_fallthru
        _
    $region64: #{auv_forward.1} parent=5 // pred_fallthru
      _
  $region6: #{auv_forward.1} parent=0 // loop_footer
    %s19 = sadd.s32 1, %s15
  $region7: #{auv_forward.1} parent=0 // loop_footer_branch
    %14 = sbr.rel target = $region3
  $region8: #{auv_forward.1} parent=0 // loop_exit
    _

</llo_original>
